<compile_context>
chip_gen: v7x
topology: tpu7x:2x2x1
jax: 0.10.0
libtpu: 0.0.40
codegen_flags: <defaults>
</compile_context>

<pallas_src>
import functools

import numpy as np

import jax
import jax.numpy as jnp
from jax.experimental import pallas as pl
from jax.experimental.pallas import tpu as pltpu


# --------------------------------------------------------------------------------------
# Static geometry: flat-lane layout, shift tables, validity masks, scatter map
# --------------------------------------------------------------------------------------
def _sepconv_geometry(H, W, k, stride, padding):
    p = padding
    Hp1, Wp1 = H + 2 * p, W + 2 * p                      # block-1 padded grid
    Ho1 = (Hp1 - k) // stride + 1                        # block-1 output == block-2 input
    Wo1 = (Wp1 - k) // stride + 1
    Lp1 = Hp1 * Wp1
    Lv1 = Lp1 - (k - 1) * Wp1 - (k - 1)                  # flat extent block-1 taps cover

    Ho2 = Ho1 + 2 * p - k + 1                            # block-2 output (stride 1)
    Wo2 = Wo1 + 2 * p - k + 1

    if stride == 1:
        # Block 2 reads block-1's masked output directly on the (Wp1-wide) flat grid,
        # shifted by a left zero-extension of p*Wp1+p lanes: exact, one lane concat total.
        assert p <= k - 1, "stride-1 fast path assumes padding <= kernel_size - 1"
        Wrow2 = Wp1
        pad_left = p * Wp1 + p
    else:
        # Reduction cell: the valid strided positions are scattered into a fresh
        # zero-padded (Hp2, Wp2) grid with one 0/1 selection matmul (no lane-strided
        # slicing, per review).
        Wrow2 = Wo1 + 2 * p
        pad_left = 0

    Lout2x = (Ho2 - 1) * Wrow2 + Wo2                     # flat extent block-2 taps cover
    max_shift2 = (k - 1) * Wrow2 + (k - 1)
    Lz2 = max_shift2 + Lout2x                            # required block-2 input length
    pad_right = (Lz2 - pad_left - Lv1) if stride == 1 else 0

    shifts1 = tuple(di * Wp1 + dj for di in range(k) for dj in range(k))
    shifts2 = tuple(di * Wrow2 + dj for di in range(k) for dj in range(k))

    # Validity mask of block-1 outputs on the flat block-1 grid.
    mask1 = np.zeros((1, 1, Lv1), np.float32)
    for i in range(Ho1):
        for j in range(Wo1):
            mask1[0, 0, stride * i * Wp1 + stride * j] = 1.0

    # Validity mask of block-2 outputs on the flat block-2 grid.
    mask2 = np.zeros((1, 1, Lout2x), np.float32)
    for i in range(Ho2):
        for j in range(Wo2):
            mask2[0, 0, i * Wrow2 + j] = 1.0

    if stride == 1:
        scat = np.zeros((8, 128), np.float32)            # unused dummy operand
    else:
        Hp2 = Ho1 + 2 * p
        scat = np.zeros((Lv1, Hp2 * Wrow2), np.float32)
        for i in range(Ho1):
            for j in range(Wo1):
                scat[stride * i * Wp1 + stride * j, (i + p) * Wrow2 + (j + p)] = 1.0
        assert Hp2 * Wrow2 >= Lz2

    return dict(Hp1=Hp1, Wp1=Wp1, Lp1=Lp1, Lv1=Lv1, Ho1=Ho1, Wo1=Wo1,
                Ho2=Ho2, Wo2=Wo2, Wrow2=Wrow2, Lout2x=Lout2x,
                pad_left=pad_left, pad_right=pad_right,
                shifts1=shifts1, shifts2=shifts2,
                mask1=mask1, mask2=mask2, scat=scat)


# --------------------------------------------------------------------------------------
# Fused kernel: whole SepConv forward for the full batch in one VMEM-resident step
# --------------------------------------------------------------------------------------
def _sepconv_fused_kernel(xp_ref, wdw1_ref, wpw1_ref, wdw2_ref, wpw2_ref,
                          mask1_ref, mask2_ref, scat_ref, out_ref, *,
                          stride, shifts1, shifts2, lv1, lout2x,
                          pad_left, pad_right, count1, count2, eps):
    n_batch = xp_ref.shape[0]
    c_in = xp_ref.shape[1]
    c_mid = wpw1_ref.shape[0]

    # ---- block 1: ReLU -> depthwise kxk (lane-shifted FMAs) -> 1x1 (VPU FMA chain) ----
    z1 = jnp.maximum(xp_ref[...], 0.0)                        # (N, C_in, Lp1); borders stay 0
    wdw1 = wdw1_ref[...]                                      # (C_in, k*k)
    r1 = wdw1[:, 0:1] * z1[:, :, shifts1[0]:shifts1[0] + lv1]
    for t in range(1, len(shifts1)):
        s0 = shifts1[t]
        r1 = r1 + wdw1[:, t:t + 1] * z1[:, :, s0:s0 + lv1]    # (N, C_in, Lv1)

    wpw1 = wpw1_ref[...]                                      # (C_mid, C_in)
    y1 = wpw1[:, 0:1] * r1[:, 0:1, :]
    for ci in range(1, c_in):
        y1 = y1 + wpw1[:, ci:ci + 1] * r1[:, ci:ci + 1, :]    # (N, C_mid, Lv1)

    # ---- BatchNorm 1 (exact mean-then-variance, training-mode, affine=False) + ReLU ----
    mask1 = mask1_ref[...]                                    # (1, 1, Lv1) 0/1 validity
    inv1 = 1.0 / count1
    sum1 = jnp.sum(jnp.sum(y1 * mask1, axis=2, keepdims=True), axis=0, keepdims=True)
    mean1 = sum1 * inv1                                       # (1, C_mid, 1)
    d1 = y1 - mean1
    var1 = jnp.sum(jnp.sum(d1 * d1 * mask1, axis=2, keepdims=True),
                   axis=0, keepdims=True) * inv1
    t1 = jnp.maximum(d1 * jax.lax.rsqrt(var1 + eps), 0.0) * mask1   # invalid lanes -> 0

    # ---- hand block-1 output to block 2 as a zero-padded flat slab ----
    if stride == 1:
        pieces = []
        if pad_left:
            pieces.append(jnp.zeros((n_batch, c_mid, pad_left), jnp.float32))
        pieces.append(t1)
        if pad_right:
            pieces.append(jnp.zeros((n_batch, c_mid, pad_right), jnp.float32))
        z2 = jnp.concatenate(pieces, axis=2) if len(pieces) > 1 else t1
    else:
        # TODO(synk): only exercised by reduction cells (stride > 1); the 0/1 selection
        # matmul avoids lane-strided gathers, HIGHEST keeps the f32 "copy" exact on the MXU.
        scat = scat_ref[...]                                  # (Lv1, Lz2)
        z2 = jnp.stack(
            [jnp.dot(t1[n], scat, preferred_element_type=jnp.float32,
                     precision=jax.lax.Precision.HIGHEST)
             for n in range(n_batch)], axis=0)

    # ---- block 2: depthwise kxk (stride 1) -> 1x1 ----
    wdw2 = wdw2_ref[...]                                      # (C_mid, k*k)
    r2 = wdw2[:, 0:1] * z2[:, :, shifts2[0]:shifts2[0] + lout2x]
    for t in range(1, len(shifts2)):
        s0 = shifts2[t]
        r2 = r2 + wdw2[:, t:t + 1] * z2[:, :, s0:s0 + lout2x]  # (N, C_mid, Lout2x)

    wpw2 = wpw2_ref[...]                                      # (C_out, C_mid)
    y2 = wpw2[:, 0:1] * r2[:, 0:1, :]
    for ci in range(1, c_mid):
        y2 = y2 + wpw2[:, ci:ci + 1] * r2[:, ci:ci + 1, :]    # (N, C_out, Lout2x)

    # ---- BatchNorm 2 (masked, exact) + single lane-dense store ----
    mask2 = mask2_ref[...]                                    # (1, 1, Lout2x)
    inv2 = 1.0 / count2
    sum2 = jnp.sum(jnp.sum(y2 * mask2, axis=2, keepdims=True), axis=0, keepdims=True)
    mean2 = sum2 * inv2
    d2 = y2 - mean2
    var2 = jnp.sum(jnp.sum(d2 * d2 * mask2, axis=2, keepdims=True),
                   axis=0, keepdims=True) * inv2
    out_ref[...] = (d2 * jax.lax.rsqrt(var2 + eps)).astype(out_ref.dtype)


# --------------------------------------------------------------------------------------
# Wrapper
# --------------------------------------------------------------------------------------
def sepconv_forward(x, w_dw1, w_pw1, w_dw2, w_pw2, *,
                    kernel_size, stride, padding, eps=1e-5):
    """Forward pass of SepConv (training-mode BatchNorm statistics, affine=False)."""
    x = x.astype(jnp.float32)
    N, C_in, H, W = x.shape
    C_mid = w_pw1.shape[0]
    C_out = w_pw2.shape[0]
    k = kernel_size
    p = padding

    g = _sepconv_geometry(H, W, k, stride, p)

    # Block-1 zero padding + spatial flattening: tiny one-off XLA ops (keeps concatenate /
    # relayout padding work out of the kernel).
    xp = jnp.pad(x, ((0, 0), (0, 0), (p, p), (p, p))).reshape(N, C_in, g["Lp1"])

    # PyTorch weight layouts -> small dense tables (loaded once into vregs in the kernel).
    wdw1 = w_dw1.reshape(C_in, k * k).astype(jnp.float32)     # (C_in, 1, k, k)
    wpw1 = w_pw1.reshape(C_mid, C_in).astype(jnp.float32)     # (C_mid, C_in, 1, 1)
    wdw2 = w_dw2.reshape(C_mid, k * k).astype(jnp.float32)
    wpw2 = w_pw2.reshape(C_out, C_mid).astype(jnp.float32)

    kern = functools.partial(
        _sepconv_fused_kernel,
        stride=stride, shifts1=g["shifts1"], shifts2=g["shifts2"],
        lv1=g["Lv1"], lout2x=g["Lout2x"],
        pad_left=g["pad_left"], pad_right=g["pad_right"],
        count1=float(N * g["Ho1"] * g["Wo1"]),
        count2=float(N * g["Ho2"] * g["Wo2"]),
        eps=float(eps))

    vmem = functools.partial(pl.BlockSpec, memory_space=pltpu.MemorySpace.VMEM)
    out_flat = pl.pallas_call(
        kern,
        out_shape=jax.ShapeDtypeStruct((N, C_out, g["Lout2x"]), jnp.float32),
        in_specs=[vmem() for _ in range(8)],
        out_specs=vmem(),
    )(xp, wdw1, wpw1, wdw2, wpw2,
      jnp.asarray(g["mask1"]), jnp.asarray(g["mask2"]), jnp.asarray(g["scat"]))

    # Crop the lane-dense flat slab back to (N, C_out, Ho2, Wo2): wrapper-side layout
    # plumbing on a tiny tensor (fused by XLA).
    tail = g["Ho2"] * g["Wrow2"] - g["Lout2x"]
    y = jnp.pad(out_flat, ((0, 0), (0, 0), (0, tail)))
    y = y.reshape(N, C_out, g["Ho2"], g["Wrow2"])[:, :, :, :g["Wo2"]]
    return y


# --------------------------------------------------------------------------------------
# Pure-JAX reference (matches PyTorch training-mode semantics)
# --------------------------------------------------------------------------------------
def _sepconv_reference(x, w_dw1, w_pw1, w_dw2, w_pw2, *,
                       kernel_size, stride, padding, eps=1e-5):
    def dwconv(a, w, s):
        C = a.shape[1]
        return jax.lax.conv_general_dilated(
            a, w, window_strides=(s, s),
            padding=[(padding, padding), (padding, padding)],
            dimension_numbers=('NCHW', 'OIHW', 'NCHW'),
            feature_group_count=C, precision=jax.lax.Precision.HIGHEST)

    def pwconv(a, w):
        return jax.lax.conv_general_dilated(
            a, w, window_strides=(1, 1), padding='VALID',
            dimension_numbers=('NCHW', 'OIHW', 'NCHW'),
            precision=jax.lax.Precision.HIGHEST)

    def bn(a):
        m = jnp.mean(a, axis=(0, 2, 3), keepdims=True)
        v = jnp.var(a, axis=(0, 2, 3), keepdims=True)
        return (a - m) * jax.lax.rsqrt(v + eps)

    x = x.astype(jnp.float32)
    y = jax.nn.relu(x)
    y = dwconv(y, w_dw1.astype(jnp.float32), stride)
    y = pwconv(y, w_pw1.astype(jnp.float32))
    y = bn(y)
    y = jax.nn.relu(y)
    y = dwconv(y, w_dw2.astype(jnp.float32), 1)
    y = pwconv(y, w_pw2.astype(jnp.float32))
    y = bn(y)
    return y


# --------------------------------------------------------------------------------------
# Demo / self-test
# --------------------------------------------------------------------------------------
if __name__ == "__main__":
    key = jax.random.PRNGKey(0)
    kx, k1, k2, k3, k4 = jax.random.split(key, 5)

    N, C_in, H, W = 2, 4, 16, 16
    C_out = 8
    kernel_size, stride, padding = 3, 1, 1

    x = jax.random.normal(kx, (N, C_in, H, W), dtype=jnp.float32)

    # PyTorch-shaped weights (bias=False everywhere, BN affine=False), kaiming-ish bounds.
    b_dw = 1.0 / ((kernel_size * kernel_size) ** 0.5)
    b_pw = 1.0 / (C_in ** 0.5)
    w_dw1 = jax.random.uniform(k1, (C_in, 1, kernel_size, kernel_size),
                               minval=-b_dw, maxval=b_dw, dtype=jnp.float32)
    w_pw1 = jax.random.uniform(k2, (C_in, C_in, 1, 1),
                               minval=-b_pw, maxval=b_pw, dtype=jnp.float32)
    w_dw2 = jax.random.uniform(k3, (C_in, 1, kernel_size, kernel_size),
                               minval=-b_dw, maxval=b_dw, dtype=jnp.float32)
    w_pw2 = jax.random.uniform(k4, (C_out, C_in, 1, 1),
                               minval=-b_pw, maxval=b_pw, dtype=jnp.float32)

    fwd = jax.jit(functools.partial(sepconv_forward, kernel_size=kernel_size,
                                    stride=stride, padding=padding))
    y = jax.block_until_ready(fwd(x, w_dw1, w_pw1, w_dw2, w_pw2))

    y_ref = _sepconv_reference(x, w_dw1, w_pw1, w_dw2, w_pw2,
                               kernel_size=kernel_size, stride=stride, padding=padding)

    assert y.shape == (N, C_out, H, W), y.shape
    max_err = float(jnp.max(jnp.abs(y - y_ref)))
    assert jnp.allclose(y, y_ref, rtol=1e-4, atol=1e-4), max_err

    print("KERNEL_OK")
</pallas_src>

<mosaic_0001>
module attributes {stable_mosaic.version = 11 : i64} {
  func.func @_sepconv_fused_kernel(%arg0: memref<2x4x324xf32, #tpu.memory_space<vmem>>, %arg1: memref<4x9xf32, #tpu.memory_space<vmem>>, %arg2: memref<4x4xf32, #tpu.memory_space<vmem>>, %arg3: memref<4x9xf32, #tpu.memory_space<vmem>>, %arg4: memref<8x4xf32, #tpu.memory_space<vmem>>, %arg5: memref<1x1x286xf32, #tpu.memory_space<vmem>>, %arg6: memref<1x1x286xf32, #tpu.memory_space<vmem>>, %arg7: memref<8x128xf32, #tpu.memory_space<vmem>>, %arg8: memref<2x8x286xf32, #tpu.memory_space<vmem>>) attributes {dimension_semantics = [], scalar_prefetch = 0 : i64, scratch_operands = 0 : i64, tpu.core_type = #tpu.core_type<tc>} {
    %c0 = arith.constant 0 : index
    %c0_0 = arith.constant 0 : index
    %c0_1 = arith.constant 0 : index
    %0 = vector.load %arg0[%c0, %c0_0, %c0_1] : memref<2x4x324xf32, #tpu.memory_space<vmem>>, vector<2x4x324xf32>
    %cst = arith.constant 0.000000e+00 : f32
    %1 = vector.broadcast %cst : f32 to vector<2x4x324xf32>
    %2 = arith.maximumf %0, %1 : vector<2x4x324xf32>
    %c0_2 = arith.constant 0 : index
    %c0_3 = arith.constant 0 : index
    %3 = vector.load %arg1[%c0_2, %c0_3] : memref<4x9xf32, #tpu.memory_space<vmem>>, vector<4x9xf32>
    %4 = vector.extract_strided_slice %3 {offsets = [0, 0], sizes = [4, 1], strides = [1, 1]} : vector<4x9xf32> to vector<4x1xf32>
    %5 = vector.extract_strided_slice %2 {offsets = [0, 0, 0], sizes = [2, 4, 286], strides = [1, 1, 1]} : vector<2x4x324xf32> to vector<2x4x286xf32>
    %6 = vector.shape_cast %4 : vector<4x1xf32> to vector<1x4x1xf32>
    %7 = vector.broadcast %6 : vector<1x4x1xf32> to vector<2x4x286xf32>
    %8 = arith.mulf %7, %5 : vector<2x4x286xf32>
    %9 = vector.extract_strided_slice %3 {offsets = [0, 1], sizes = [4, 1], strides = [1, 1]} : vector<4x9xf32> to vector<4x1xf32>
    %10 = vector.extract_strided_slice %2 {offsets = [0, 0, 1], sizes = [2, 4, 286], strides = [1, 1, 1]} : vector<2x4x324xf32> to vector<2x4x286xf32>
    %11 = vector.shape_cast %9 : vector<4x1xf32> to vector<1x4x1xf32>
    %12 = vector.broadcast %11 : vector<1x4x1xf32> to vector<2x4x286xf32>
    %13 = arith.mulf %12, %10 : vector<2x4x286xf32>
    %14 = arith.addf %8, %13 : vector<2x4x286xf32>
    %15 = vector.extract_strided_slice %3 {offsets = [0, 2], sizes = [4, 1], strides = [1, 1]} : vector<4x9xf32> to vector<4x1xf32>
    %16 = vector.extract_strided_slice %2 {offsets = [0, 0, 2], sizes = [2, 4, 286], strides = [1, 1, 1]} : vector<2x4x324xf32> to vector<2x4x286xf32>
    %17 = vector.shape_cast %15 : vector<4x1xf32> to vector<1x4x1xf32>
    %18 = vector.broadcast %17 : vector<1x4x1xf32> to vector<2x4x286xf32>
    %19 = arith.mulf %18, %16 : vector<2x4x286xf32>
    %20 = arith.addf %14, %19 : vector<2x4x286xf32>
    %21 = vector.extract_strided_slice %3 {offsets = [0, 3], sizes = [4, 1], strides = [1, 1]} : vector<4x9xf32> to vector<4x1xf32>
    %22 = vector.extract_strided_slice %2 {offsets = [0, 0, 18], sizes = [2, 4, 286], strides = [1, 1, 1]} : vector<2x4x324xf32> to vector<2x4x286xf32>
    %23 = vector.shape_cast %21 : vector<4x1xf32> to vector<1x4x1xf32>
    %24 = vector.broadcast %23 : vector<1x4x1xf32> to vector<2x4x286xf32>
    %25 = arith.mulf %24, %22 : vector<2x4x286xf32>
    %26 = arith.addf %20, %25 : vector<2x4x286xf32>
    %27 = vector.extract_strided_slice %3 {offsets = [0, 4], sizes = [4, 1], strides = [1, 1]} : vector<4x9xf32> to vector<4x1xf32>
    %28 = vector.extract_strided_slice %2 {offsets = [0, 0, 19], sizes = [2, 4, 286], strides = [1, 1, 1]} : vector<2x4x324xf32> to vector<2x4x286xf32>
    %29 = vector.shape_cast %27 : vector<4x1xf32> to vector<1x4x1xf32>
    %30 = vector.broadcast %29 : vector<1x4x1xf32> to vector<2x4x286xf32>
    %31 = arith.mulf %30, %28 : vector<2x4x286xf32>
    %32 = arith.addf %26, %31 : vector<2x4x286xf32>
    %33 = vector.extract_strided_slice %3 {offsets = [0, 5], sizes = [4, 1], strides = [1, 1]} : vector<4x9xf32> to vector<4x1xf32>
    %34 = vector.extract_strided_slice %2 {offsets = [0, 0, 20], sizes = [2, 4, 286], strides = [1, 1, 1]} : vector<2x4x324xf32> to vector<2x4x286xf32>
    %35 = vector.shape_cast %33 : vector<4x1xf32> to vector<1x4x1xf32>
    %36 = vector.broadcast %35 : vector<1x4x1xf32> to vector<2x4x286xf32>
    %37 = arith.mulf %36, %34 : vector<2x4x286xf32>
    %38 = arith.addf %32, %37 : vector<2x4x286xf32>
    %39 = vector.extract_strided_slice %3 {offsets = [0, 6], sizes = [4, 1], strides = [1, 1]} : vector<4x9xf32> to vector<4x1xf32>
    %40 = vector.extract_strided_slice %2 {offsets = [0, 0, 36], sizes = [2, 4, 286], strides = [1, 1, 1]} : vector<2x4x324xf32> to vector<2x4x286xf32>
    %41 = vector.shape_cast %39 : vector<4x1xf32> to vector<1x4x1xf32>
    %42 = vector.broadcast %41 : vector<1x4x1xf32> to vector<2x4x286xf32>
    %43 = arith.mulf %42, %40 : vector<2x4x286xf32>
    %44 = arith.addf %38, %43 : vector<2x4x286xf32>
    %45 = vector.extract_strided_slice %3 {offsets = [0, 7], sizes = [4, 1], strides = [1, 1]} : vector<4x9xf32> to vector<4x1xf32>
    %46 = vector.extract_strided_slice %2 {offsets = [0, 0, 37], sizes = [2, 4, 286], strides = [1, 1, 1]} : vector<2x4x324xf32> to vector<2x4x286xf32>
    %47 = vector.shape_cast %45 : vector<4x1xf32> to vector<1x4x1xf32>
    %48 = vector.broadcast %47 : vector<1x4x1xf32> to vector<2x4x286xf32>
    %49 = arith.mulf %48, %46 : vector<2x4x286xf32>
    %50 = arith.addf %44, %49 : vector<2x4x286xf32>
    %51 = vector.extract_strided_slice %3 {offsets = [0, 8], sizes = [4, 1], strides = [1, 1]} : vector<4x9xf32> to vector<4x1xf32>
    %52 = vector.extract_strided_slice %2 {offsets = [0, 0, 38], sizes = [2, 4, 286], strides = [1, 1, 1]} : vector<2x4x324xf32> to vector<2x4x286xf32>
    %53 = vector.shape_cast %51 : vector<4x1xf32> to vector<1x4x1xf32>
    %54 = vector.broadcast %53 : vector<1x4x1xf32> to vector<2x4x286xf32>
    %55 = arith.mulf %54, %52 : vector<2x4x286xf32>
    %56 = arith.addf %50, %55 : vector<2x4x286xf32>
    %c0_4 = arith.constant 0 : index
    %c0_5 = arith.constant 0 : index
    %57 = vector.load %arg2[%c0_4, %c0_5] : memref<4x4xf32, #tpu.memory_space<vmem>>, vector<4x4xf32>
    %58 = vector.extract_strided_slice %57 {offsets = [0, 0], sizes = [4, 1], strides = [1, 1]} : vector<4x4xf32> to vector<4x1xf32>
    %59 = vector.extract_strided_slice %56 {offsets = [0, 0, 0], sizes = [2, 1, 286], strides = [1, 1, 1]} : vector<2x4x286xf32> to vector<2x1x286xf32>
    %60 = vector.shape_cast %58 : vector<4x1xf32> to vector<1x4x1xf32>
    %61 = vector.broadcast %60 : vector<1x4x1xf32> to vector<2x4x286xf32>
    %62 = vector.broadcast %59 : vector<2x1x286xf32> to vector<2x4x286xf32>
    %63 = arith.mulf %61, %62 : vector<2x4x286xf32>
    %64 = vector.extract_strided_slice %57 {offsets = [0, 1], sizes = [4, 1], strides = [1, 1]} : vector<4x4xf32> to vector<4x1xf32>
    %65 = vector.extract_strided_slice %56 {offsets = [0, 1, 0], sizes = [2, 1, 286], strides = [1, 1, 1]} : vector<2x4x286xf32> to vector<2x1x286xf32>
    %66 = vector.shape_cast %64 : vector<4x1xf32> to vector<1x4x1xf32>
    %67 = vector.broadcast %66 : vector<1x4x1xf32> to vector<2x4x286xf32>
    %68 = vector.broadcast %65 : vector<2x1x286xf32> to vector<2x4x286xf32>
    %69 = arith.mulf %67, %68 : vector<2x4x286xf32>
    %70 = arith.addf %63, %69 : vector<2x4x286xf32>
    %71 = vector.extract_strided_slice %57 {offsets = [0, 2], sizes = [4, 1], strides = [1, 1]} : vector<4x4xf32> to vector<4x1xf32>
    %72 = vector.extract_strided_slice %56 {offsets = [0, 2, 0], sizes = [2, 1, 286], strides = [1, 1, 1]} : vector<2x4x286xf32> to vector<2x1x286xf32>
    %73 = vector.shape_cast %71 : vector<4x1xf32> to vector<1x4x1xf32>
    %74 = vector.broadcast %73 : vector<1x4x1xf32> to vector<2x4x286xf32>
    %75 = vector.broadcast %72 : vector<2x1x286xf32> to vector<2x4x286xf32>
    %76 = arith.mulf %74, %75 : vector<2x4x286xf32>
    %77 = arith.addf %70, %76 : vector<2x4x286xf32>
    %78 = vector.extract_strided_slice %57 {offsets = [0, 3], sizes = [4, 1], strides = [1, 1]} : vector<4x4xf32> to vector<4x1xf32>
    %79 = vector.extract_strided_slice %56 {offsets = [0, 3, 0], sizes = [2, 1, 286], strides = [1, 1, 1]} : vector<2x4x286xf32> to vector<2x1x286xf32>
    %80 = vector.shape_cast %78 : vector<4x1xf32> to vector<1x4x1xf32>
    %81 = vector.broadcast %80 : vector<1x4x1xf32> to vector<2x4x286xf32>
    %82 = vector.broadcast %79 : vector<2x1x286xf32> to vector<2x4x286xf32>
    %83 = arith.mulf %81, %82 : vector<2x4x286xf32>
    %84 = arith.addf %77, %83 : vector<2x4x286xf32>
    %c0_6 = arith.constant 0 : index
    %c0_7 = arith.constant 0 : index
    %c0_8 = arith.constant 0 : index
    %85 = vector.load %arg5[%c0_6, %c0_7, %c0_8] : memref<1x1x286xf32, #tpu.memory_space<vmem>>, vector<1x1x286xf32>
    %86 = vector.broadcast %85 : vector<1x1x286xf32> to vector<2x4x286xf32>
    %87 = arith.mulf %84, %86 : vector<2x4x286xf32>
    %cst_9 = arith.constant dense<0.000000e+00> : vector<2x4xf32>
    %88 = vector.multi_reduction <add>, %87, %cst_9 [2] : vector<2x4x286xf32> to vector<2x4xf32>
    %89 = vector.shape_cast %88 : vector<2x4xf32> to vector<2x4x1xf32>
    %cst_10 = arith.constant dense<0.000000e+00> : vector<4x1xf32>
    %90 = vector.multi_reduction <add>, %89, %cst_10 [0] : vector<2x4x1xf32> to vector<4x1xf32>
    %91 = vector.shape_cast %90 : vector<4x1xf32> to vector<1x4x1xf32>
    %cst_11 = arith.constant 0.001953125 : f32
    %92 = vector.broadcast %cst_11 : f32 to vector<1x4x1xf32>
    %93 = arith.mulf %91, %92 : vector<1x4x1xf32>
    %94 = vector.broadcast %93 : vector<1x4x1xf32> to vector<2x4x286xf32>
    %95 = arith.subf %84, %94 : vector<2x4x286xf32>
    %96 = arith.mulf %95, %95 : vector<2x4x286xf32>
    %97 = vector.broadcast %85 : vector<1x1x286xf32> to vector<2x4x286xf32>
    %98 = arith.mulf %96, %97 : vector<2x4x286xf32>
    %cst_12 = arith.constant dense<0.000000e+00> : vector<2x4xf32>
    %99 = vector.multi_reduction <add>, %98, %cst_12 [2] : vector<2x4x286xf32> to vector<2x4xf32>
    %100 = vector.shape_cast %99 : vector<2x4xf32> to vector<2x4x1xf32>
    %cst_13 = arith.constant dense<0.000000e+00> : vector<4x1xf32>
    %101 = vector.multi_reduction <add>, %100, %cst_13 [0] : vector<2x4x1xf32> to vector<4x1xf32>
    %102 = vector.shape_cast %101 : vector<4x1xf32> to vector<1x4x1xf32>
    %cst_14 = arith.constant 0.001953125 : f32
    %103 = vector.broadcast %cst_14 : f32 to vector<1x4x1xf32>
    %104 = arith.mulf %102, %103 : vector<1x4x1xf32>
    %cst_15 = arith.constant 9.99999974E-6 : f32
    %105 = vector.broadcast %cst_15 : f32 to vector<1x4x1xf32>
    %106 = arith.addf %104, %105 : vector<1x4x1xf32>
    %107 = math.rsqrt %106 : vector<1x4x1xf32>
    %108 = vector.broadcast %107 : vector<1x4x1xf32> to vector<2x4x286xf32>
    %109 = arith.mulf %95, %108 : vector<2x4x286xf32>
    %cst_16 = arith.constant 0.000000e+00 : f32
    %110 = vector.broadcast %cst_16 : f32 to vector<2x4x286xf32>
    %111 = arith.maximumf %109, %110 : vector<2x4x286xf32>
    %112 = vector.broadcast %85 : vector<1x1x286xf32> to vector<2x4x286xf32>
    %113 = arith.mulf %111, %112 : vector<2x4x286xf32>
    %cst_17 = arith.constant 0.000000e+00 : f32
    %114 = vector.broadcast %cst_17 : f32 to vector<2x4x19xf32>
    %cst_18 = arith.constant 0.000000e+00 : f32
    %115 = vector.broadcast %cst_18 : f32 to vector<2x4x19xf32>
    %116 = tpu.concatenate %114, %113, %115 in 2 : vector<2x4x19xf32>, vector<2x4x286xf32>, vector<2x4x19xf32> -> vector<2x4x324xf32>
    %c0_19 = arith.constant 0 : index
    %c0_20 = arith.constant 0 : index
    %117 = vector.load %arg3[%c0_19, %c0_20] : memref<4x9xf32, #tpu.memory_space<vmem>>, vector<4x9xf32>
    %118 = vector.extract_strided_slice %117 {offsets = [0, 0], sizes = [4, 1], strides = [1, 1]} : vector<4x9xf32> to vector<4x1xf32>
    %119 = vector.extract_strided_slice %116 {offsets = [0, 0, 0], sizes = [2, 4, 286], strides = [1, 1, 1]} : vector<2x4x324xf32> to vector<2x4x286xf32>
    %120 = vector.shape_cast %118 : vector<4x1xf32> to vector<1x4x1xf32>
    %121 = vector.broadcast %120 : vector<1x4x1xf32> to vector<2x4x286xf32>
    %122 = arith.mulf %121, %119 : vector<2x4x286xf32>
    %123 = vector.extract_strided_slice %117 {offsets = [0, 1], sizes = [4, 1], strides = [1, 1]} : vector<4x9xf32> to vector<4x1xf32>
    %124 = vector.extract_strided_slice %116 {offsets = [0, 0, 1], sizes = [2, 4, 286], strides = [1, 1, 1]} : vector<2x4x324xf32> to vector<2x4x286xf32>
    %125 = vector.shape_cast %123 : vector<4x1xf32> to vector<1x4x1xf32>
    %126 = vector.broadcast %125 : vector<1x4x1xf32> to vector<2x4x286xf32>
    %127 = arith.mulf %126, %124 : vector<2x4x286xf32>
    %128 = arith.addf %122, %127 : vector<2x4x286xf32>
    %129 = vector.extract_strided_slice %117 {offsets = [0, 2], sizes = [4, 1], strides = [1, 1]} : vector<4x9xf32> to vector<4x1xf32>
    %130 = vector.extract_strided_slice %116 {offsets = [0, 0, 2], sizes = [2, 4, 286], strides = [1, 1, 1]} : vector<2x4x324xf32> to vector<2x4x286xf32>
    %131 = vector.shape_cast %129 : vector<4x1xf32> to vector<1x4x1xf32>
    %132 = vector.broadcast %131 : vector<1x4x1xf32> to vector<2x4x286xf32>
    %133 = arith.mulf %132, %130 : vector<2x4x286xf32>
    %134 = arith.addf %128, %133 : vector<2x4x286xf32>
    %135 = vector.extract_strided_slice %117 {offsets = [0, 3], sizes = [4, 1], strides = [1, 1]} : vector<4x9xf32> to vector<4x1xf32>
    %136 = vector.extract_strided_slice %116 {offsets = [0, 0, 18], sizes = [2, 4, 286], strides = [1, 1, 1]} : vector<2x4x324xf32> to vector<2x4x286xf32>
    %137 = vector.shape_cast %135 : vector<4x1xf32> to vector<1x4x1xf32>
    %138 = vector.broadcast %137 : vector<1x4x1xf32> to vector<2x4x286xf32>
    %139 = arith.mulf %138, %136 : vector<2x4x286xf32>
    %140 = arith.addf %134, %139 : vector<2x4x286xf32>
    %141 = vector.extract_strided_slice %117 {offsets = [0, 4], sizes = [4, 1], strides = [1, 1]} : vector<4x9xf32> to vector<4x1xf32>
    %142 = vector.extract_strided_slice %116 {offsets = [0, 0, 19], sizes = [2, 4, 286], strides = [1, 1, 1]} : vector<2x4x324xf32> to vector<2x4x286xf32>
    %143 = vector.shape_cast %141 : vector<4x1xf32> to vector<1x4x1xf32>
    %144 = vector.broadcast %143 : vector<1x4x1xf32> to vector<2x4x286xf32>
    %145 = arith.mulf %144, %142 : vector<2x4x286xf32>
    %146 = arith.addf %140, %145 : vector<2x4x286xf32>
    %147 = vector.extract_strided_slice %117 {offsets = [0, 5], sizes = [4, 1], strides = [1, 1]} : vector<4x9xf32> to vector<4x1xf32>
    %148 = vector.extract_strided_slice %116 {offsets = [0, 0, 20], sizes = [2, 4, 286], strides = [1, 1, 1]} : vector<2x4x324xf32> to vector<2x4x286xf32>
    %149 = vector.shape_cast %147 : vector<4x1xf32> to vector<1x4x1xf32>
    %150 = vector.broadcast %149 : vector<1x4x1xf32> to vector<2x4x286xf32>
    %151 = arith.mulf %150, %148 : vector<2x4x286xf32>
    %152 = arith.addf %146, %151 : vector<2x4x286xf32>
    %153 = vector.extract_strided_slice %117 {offsets = [0, 6], sizes = [4, 1], strides = [1, 1]} : vector<4x9xf32> to vector<4x1xf32>
    %154 = vector.extract_strided_slice %116 {offsets = [0, 0, 36], sizes = [2, 4, 286], strides = [1, 1, 1]} : vector<2x4x324xf32> to vector<2x4x286xf32>
    %155 = vector.shape_cast %153 : vector<4x1xf32> to vector<1x4x1xf32>
    %156 = vector.broadcast %155 : vector<1x4x1xf32> to vector<2x4x286xf32>
    %157 = arith.mulf %156, %154 : vector<2x4x286xf32>
    %158 = arith.addf %152, %157 : vector<2x4x286xf32>
    %159 = vector.extract_strided_slice %117 {offsets = [0, 7], sizes = [4, 1], strides = [1, 1]} : vector<4x9xf32> to vector<4x1xf32>
    %160 = vector.extract_strided_slice %116 {offsets = [0, 0, 37], sizes = [2, 4, 286], strides = [1, 1, 1]} : vector<2x4x324xf32> to vector<2x4x286xf32>
    %161 = vector.shape_cast %159 : vector<4x1xf32> to vector<1x4x1xf32>
    %162 = vector.broadcast %161 : vector<1x4x1xf32> to vector<2x4x286xf32>
    %163 = arith.mulf %162, %160 : vector<2x4x286xf32>
    %164 = arith.addf %158, %163 : vector<2x4x286xf32>
    %165 = vector.extract_strided_slice %117 {offsets = [0, 8], sizes = [4, 1], strides = [1, 1]} : vector<4x9xf32> to vector<4x1xf32>
    %166 = vector.extract_strided_slice %116 {offsets = [0, 0, 38], sizes = [2, 4, 286], strides = [1, 1, 1]} : vector<2x4x324xf32> to vector<2x4x286xf32>
    %167 = vector.shape_cast %165 : vector<4x1xf32> to vector<1x4x1xf32>
    %168 = vector.broadcast %167 : vector<1x4x1xf32> to vector<2x4x286xf32>
    %169 = arith.mulf %168, %166 : vector<2x4x286xf32>
    %170 = arith.addf %164, %169 : vector<2x4x286xf32>
    %c0_21 = arith.constant 0 : index
    %c0_22 = arith.constant 0 : index
    %171 = vector.load %arg4[%c0_21, %c0_22] : memref<8x4xf32, #tpu.memory_space<vmem>>, vector<8x4xf32>
    %172 = vector.extract_strided_slice %171 {offsets = [0, 0], sizes = [8, 1], strides = [1, 1]} : vector<8x4xf32> to vector<8x1xf32>
    %173 = vector.extract_strided_slice %170 {offsets = [0, 0, 0], sizes = [2, 1, 286], strides = [1, 1, 1]} : vector<2x4x286xf32> to vector<2x1x286xf32>
    %174 = vector.shape_cast %172 : vector<8x1xf32> to vector<1x8x1xf32>
    %175 = vector.broadcast %174 : vector<1x8x1xf32> to vector<2x8x286xf32>
    %176 = vector.broadcast %173 : vector<2x1x286xf32> to vector<2x8x286xf32>
    %177 = arith.mulf %175, %176 : vector<2x8x286xf32>
    %178 = vector.extract_strided_slice %171 {offsets = [0, 1], sizes = [8, 1], strides = [1, 1]} : vector<8x4xf32> to vector<8x1xf32>
    %179 = vector.extract_strided_slice %170 {offsets = [0, 1, 0], sizes = [2, 1, 286], strides = [1, 1, 1]} : vector<2x4x286xf32> to vector<2x1x286xf32>
    %180 = vector.shape_cast %178 : vector<8x1xf32> to vector<1x8x1xf32>
    %181 = vector.broadcast %180 : vector<1x8x1xf32> to vector<2x8x286xf32>
    %182 = vector.broadcast %179 : vector<2x1x286xf32> to vector<2x8x286xf32>
    %183 = arith.mulf %181, %182 : vector<2x8x286xf32>
    %184 = arith.addf %177, %183 : vector<2x8x286xf32>
    %185 = vector.extract_strided_slice %171 {offsets = [0, 2], sizes = [8, 1], strides = [1, 1]} : vector<8x4xf32> to vector<8x1xf32>
    %186 = vector.extract_strided_slice %170 {offsets = [0, 2, 0], sizes = [2, 1, 286], strides = [1, 1, 1]} : vector<2x4x286xf32> to vector<2x1x286xf32>
    %187 = vector.shape_cast %185 : vector<8x1xf32> to vector<1x8x1xf32>
    %188 = vector.broadcast %187 : vector<1x8x1xf32> to vector<2x8x286xf32>
    %189 = vector.broadcast %186 : vector<2x1x286xf32> to vector<2x8x286xf32>
    %190 = arith.mulf %188, %189 : vector<2x8x286xf32>
    %191 = arith.addf %184, %190 : vector<2x8x286xf32>
    %192 = vector.extract_strided_slice %171 {offsets = [0, 3], sizes = [8, 1], strides = [1, 1]} : vector<8x4xf32> to vector<8x1xf32>
    %193 = vector.extract_strided_slice %170 {offsets = [0, 3, 0], sizes = [2, 1, 286], strides = [1, 1, 1]} : vector<2x4x286xf32> to vector<2x1x286xf32>
    %194 = vector.shape_cast %192 : vector<8x1xf32> to vector<1x8x1xf32>
    %195 = vector.broadcast %194 : vector<1x8x1xf32> to vector<2x8x286xf32>
    %196 = vector.broadcast %193 : vector<2x1x286xf32> to vector<2x8x286xf32>
    %197 = arith.mulf %195, %196 : vector<2x8x286xf32>
    %198 = arith.addf %191, %197 : vector<2x8x286xf32>
    %c0_23 = arith.constant 0 : index
    %c0_24 = arith.constant 0 : index
    %c0_25 = arith.constant 0 : index
    %199 = vector.load %arg6[%c0_23, %c0_24, %c0_25] : memref<1x1x286xf32, #tpu.memory_space<vmem>>, vector<1x1x286xf32>
    %200 = vector.broadcast %199 : vector<1x1x286xf32> to vector<2x8x286xf32>
    %201 = arith.mulf %198, %200 : vector<2x8x286xf32>
    %cst_26 = arith.constant dense<0.000000e+00> : vector<2x8xf32>
    %202 = vector.multi_reduction <add>, %201, %cst_26 [2] : vector<2x8x286xf32> to vector<2x8xf32>
    %203 = vector.shape_cast %202 : vector<2x8xf32> to vector<2x8x1xf32>
    %cst_27 = arith.constant dense<0.000000e+00> : vector<8x1xf32>
    %204 = vector.multi_reduction <add>, %203, %cst_27 [0] : vector<2x8x1xf32> to vector<8x1xf32>
    %205 = vector.shape_cast %204 : vector<8x1xf32> to vector<1x8x1xf32>
    %cst_28 = arith.constant 0.001953125 : f32
    %206 = vector.broadcast %cst_28 : f32 to vector<1x8x1xf32>
    %207 = arith.mulf %205, %206 : vector<1x8x1xf32>
    %208 = vector.broadcast %207 : vector<1x8x1xf32> to vector<2x8x286xf32>
    %209 = arith.subf %198, %208 : vector<2x8x286xf32>
    %210 = arith.mulf %209, %209 : vector<2x8x286xf32>
    %211 = vector.broadcast %199 : vector<1x1x286xf32> to vector<2x8x286xf32>
    %212 = arith.mulf %210, %211 : vector<2x8x286xf32>
    %cst_29 = arith.constant dense<0.000000e+00> : vector<2x8xf32>
    %213 = vector.multi_reduction <add>, %212, %cst_29 [2] : vector<2x8x286xf32> to vector<2x8xf32>
    %214 = vector.shape_cast %213 : vector<2x8xf32> to vector<2x8x1xf32>
    %cst_30 = arith.constant dense<0.000000e+00> : vector<8x1xf32>
    %215 = vector.multi_reduction <add>, %214, %cst_30 [0] : vector<2x8x1xf32> to vector<8x1xf32>
    %216 = vector.shape_cast %215 : vector<8x1xf32> to vector<1x8x1xf32>
    %cst_31 = arith.constant 0.001953125 : f32
    %217 = vector.broadcast %cst_31 : f32 to vector<1x8x1xf32>
    %218 = arith.mulf %216, %217 : vector<1x8x1xf32>
    %cst_32 = arith.constant 9.99999974E-6 : f32
    %219 = vector.broadcast %cst_32 : f32 to vector<1x8x1xf32>
    %220 = arith.addf %218, %219 : vector<1x8x1xf32>
    %221 = math.rsqrt %220 : vector<1x8x1xf32>
    %222 = vector.broadcast %221 : vector<1x8x1xf32> to vector<2x8x286xf32>
    %223 = arith.mulf %209, %222 : vector<2x8x286xf32>
    %c0_33 = arith.constant 0 : index
    %c0_34 = arith.constant 0 : index
    %c0_35 = arith.constant 0 : index
    %224 = vector.load %arg8[%c0_33, %c0_34, %c0_35] : memref<2x8x286xf32, #tpu.memory_space<vmem>>, vector<2x8x286xf32>
    tpu.vector_store %arg8[%c0_33, %c0_34, %c0_35], %223 {strides = array<i32>} : memref<2x8x286xf32, #tpu.memory_space<vmem>>, vector<2x8x286xf32>,
    return
  }
}

</mosaic_0001>

<llo_original>
// kernel: sepconv_forward.1
$region0: #{sepconv_forward.1}
  #allocation0 [shape = 'u32[]', space=smem, size = 0x4, offset = 0x4, fixed_abs, tag = 'smem constant byte address 0x4 - core index']
  #allocation1 [shape = 'u32[144,128]{1,0:T(1,128)}', space=vmem, size = 0x12000, scoped, tag = 'internal scratch']
  %s0 = inlined_call_operand.vmem [shape: f32[2,4,324], index: 0, kind: input, shape index: {}]
  %s1 = inlined_call_operand.vmem [shape: f32[4,9], index: 1, kind: input, shape index: {}]
  %s2 = inlined_call_operand.vmem [shape: f32[4,4], index: 2, kind: input, shape index: {}]
  %s3 = inlined_call_operand.vmem [shape: f32[4,9], index: 3, kind: input, shape index: {}]
  %s4 = inlined_call_operand.vmem [shape: f32[8,4], index: 4, kind: input, shape index: {}]
  %s5 = inlined_call_operand.vmem [shape: f32[1,1,286], index: 5, kind: input, shape index: {}, may-alias: {5,6}]
  %s6 = inlined_call_operand.vmem [shape: f32[1,1,286], index: 6, kind: input, shape index: {}, may-alias: {5,6}]
  %s7 = inlined_call_operand.vmem [shape: f32[8,128], index: 7, kind: input, shape index: {}]
  %s8 = inlined_call_operand.vmem [shape: f32[2,8,286], index: 8, kind: output, shape index: {}]
  %s9 = sld [smem:[#allocation0]]
  $region42: #{sepconv_forward.1} parent=0
    _
  %s11 = ssub.s32 1, %s9
  %s12 = scalar_select 0, %s11, %s9
  // Predicated region
  $region2: #{sepconv_forward.1} parent=0 // pred_check
    _
  $region3: #{sepconv_forward.1} parent=0 // pred_check_branch
    %14 = sbr.rel (0) target = $region5
  $region4: #{sepconv_forward.1} parent=0 // pred_region
    _
  $region5: #{sepconv_forward.1} parent=0 // pred_fallthru
    _
  // Predicated region
  $region6: #{sepconv_forward.1} parent=0 // pred_check
    _
  $region7: #{sepconv_forward.1} parent=0 // pred_check_branch
    %16 = sbr.rel (0) target = $region9
  $region8: #{sepconv_forward.1} parent=0 // pred_region
    _
  $region9: #{sepconv_forward.1} parent=0 // pred_fallthru
    _
  // Predicated region
  $region10: #{sepconv_forward.1} parent=0 // pred_check
    _
  $region11: #{sepconv_forward.1} parent=0 // pred_check_branch
    %18 = sbr.rel (0) target = $region13
  $region12: #{sepconv_forward.1} parent=0 // pred_region
    _
  $region13: #{sepconv_forward.1} parent=0 // pred_fallthru
    _
  // Predicated region
  $region14: #{sepconv_forward.1} parent=0 // pred_check
    _
  $region15: #{sepconv_forward.1} parent=0 // pred_check_branch
    %20 = sbr.rel (0) target = $region17
  $region16: #{sepconv_forward.1} parent=0 // pred_region
    _
  $region17: #{sepconv_forward.1} parent=0 // pred_fallthru
    _
  // Predicated region
  $region18: #{sepconv_forward.1} parent=0 // pred_check
    _
  $region19: #{sepconv_forward.1} parent=0 // pred_check_branch
    %22 = sbr.rel (0) target = $region21
  $region20: #{sepconv_forward.1} parent=0 // pred_region
    _
  $region21: #{sepconv_forward.1} parent=0 // pred_fallthru
    _
  // Predicated region
  $region22: #{sepconv_forward.1} parent=0 // pred_check
    _
  $region23: #{sepconv_forward.1} parent=0 // pred_check_branch
    %24 = sbr.rel (0) target = $region25
  $region24: #{sepconv_forward.1} parent=0 // pred_region
    _
  $region25: #{sepconv_forward.1} parent=0 // pred_fallthru
    _
  // Predicated region
  $region26: #{sepconv_forward.1} parent=0 // pred_check
    _
  $region27: #{sepconv_forward.1} parent=0 // pred_check_branch
    %26 = sbr.rel (0) target = $region29
  $region28: #{sepconv_forward.1} parent=0 // pred_region
    _
  $region29: #{sepconv_forward.1} parent=0 // pred_fallthru
    _
  // Predicated region
  $region30: #{sepconv_forward.1} parent=0 // pred_check
    _
  $region31: #{sepconv_forward.1} parent=0 // pred_check_branch
    %28 = sbr.rel (0) target = $region33
  $region32: #{sepconv_forward.1} parent=0 // pred_region
    _
  $region33: #{sepconv_forward.1} parent=0 // pred_fallthru
    _
  %v29 = vld [vmem:[%s0] sm:$0xff]
  %v30 = vld [vmem:[%s0 + $0x8] sm:$0xf]
  %v31 = vld [vmem:[%s0 + $0xc] sm:$0xff]
  %v32 = vld [vmem:[%s0 + $0x14] sm:$0xf]
  %v33 = vmax.f32 %v29, 0.0
  %v34 = vmax.f32 %v30, 0.0
  %v35 = vmax.f32 %v31, 0.0
  %v36 = vmax.f32 %v32, 0.0
  %v37 = vld [vmem:[%s1] sm:$0xf]
  %39 = vset.pattern.permute.xlu0 0
  %40 = vperm.xlu0 %39, %v37
  %v41 = vpop.permute.xlu0 %40
  %v47 = vcombine.high %v33, %v33
  %v48 = vcombine.high %v35, %v35
  %v51 = vmul.f32 %v41, %v33
  %v52 = vmul.f32 %v41, %v47
  %v53 = vmul.f32 %v41, %v34
  %v54 = vmul.f32 %v41, %v35
  %v55 = vmul.f32 %v41, %v48
  %v56 = vmul.f32 %v41, %v36
  %57 = vset.pattern.permute.xlu0 1
  %58 = vperm.xlu0 %57, %v37
  %v59 = vpop.permute.xlu0 %58
  %61 = vrot.lane.b32.xlu0 %v33, 127
  %v62 = vpop.permute.xlu0 %61
  %63 = vrot.lane.b32.xlu0 %v47, 127
  %v64 = vpop.permute.xlu0 %63
  %65 = vrot.lane.b32.xlu0 %v34, 127
  %v66 = vpop.permute.xlu0 %65
  %67 = vrot.lane.b32.xlu0 %v35, 127
  %v68 = vpop.permute.xlu0 %67
  %69 = vrot.lane.b32.xlu0 %v48, 127
  %v70 = vpop.permute.xlu0 %69
  %71 = vrot.lane.b32.xlu0 %v36, 127
  %v72 = vpop.permute.xlu0 %71
  %vm73 = vcmask 1039360
  %v74 = vsel %vm73, %v62, %v64
  %v75 = vsel %vm73, %v64, %v66
  %v76 = vsel %vm73, %v68, %v70
  %v77 = vsel %vm73, %v70, %v72
  %v84 = vmul.f32 %v59, %v74
  %v85 = vmul.f32 %v59, %v75
  %v86 = vmul.f32 %v59, %v66
  %v87 = vmul.f32 %v59, %v76
  %v88 = vmul.f32 %v59, %v77
  %v89 = vmul.f32 %v59, %v72
  %v90 = vadd.f32 %v51, %v84
  %v91 = vadd.f32 %v52, %v85
  %v92 = vadd.f32 %v53, %v86
  %v93 = vadd.f32 %v54, %v87
  %v94 = vadd.f32 %v55, %v88
  %v95 = vadd.f32 %v56, %v89
  %96 = vset.pattern.permute.xlu0 2
  %97 = vperm.xlu0 %96, %v37
  %v98 = vpop.permute.xlu0 %97
  %100 = vrot.lane.b32.xlu0 %v33, 126
  %v101 = vpop.permute.xlu0 %100
  %102 = vrot.lane.b32.xlu0 %v47, 126
  %v103 = vpop.permute.xlu0 %102
  %104 = vrot.lane.b32.xlu0 %v34, 126
  %v105 = vpop.permute.xlu0 %104
  %106 = vrot.lane.b32.xlu0 %v35, 126
  %v107 = vpop.permute.xlu0 %106
  %108 = vrot.lane.b32.xlu0 %v48, 126
  %v109 = vpop.permute.xlu0 %108
  %110 = vrot.lane.b32.xlu0 %v36, 126
  %v111 = vpop.permute.xlu0 %110
  %vm112 = vcmask 1031168
  %v113 = vsel %vm112, %v101, %v103
  %v114 = vsel %vm112, %v103, %v105
  %v115 = vsel %vm112, %v107, %v109
  %v116 = vsel %vm112, %v109, %v111
  %v123 = vmul.f32 %v98, %v113
  %v124 = vmul.f32 %v98, %v114
  %v125 = vmul.f32 %v98, %v105
  %v126 = vmul.f32 %v98, %v115
  %v127 = vmul.f32 %v98, %v116
  %v128 = vmul.f32 %v98, %v111
  %v129 = vadd.f32 %v90, %v123
  %v130 = vadd.f32 %v91, %v124
  %v131 = vadd.f32 %v92, %v125
  %v132 = vadd.f32 %v93, %v126
  %v133 = vadd.f32 %v94, %v127
  %v134 = vadd.f32 %v95, %v128
  %135 = vset.pattern.permute.xlu0 3
  %136 = vperm.xlu0 %135, %v37
  %v137 = vpop.permute.xlu0 %136
  %139 = vrot.lane.b32.xlu0 %v33, 110
  %v140 = vpop.permute.xlu0 %139
  %141 = vrot.lane.b32.xlu0 %v47, 110
  %v142 = vpop.permute.xlu0 %141
  %143 = vrot.lane.b32.xlu0 %v34, 110
  %v144 = vpop.permute.xlu0 %143
  %145 = vrot.lane.b32.xlu0 %v35, 110
  %v146 = vpop.permute.xlu0 %145
  %147 = vrot.lane.b32.xlu0 %v48, 110
  %v148 = vpop.permute.xlu0 %147
  %149 = vrot.lane.b32.xlu0 %v36, 110
  %v150 = vpop.permute.xlu0 %149
  %vm151 = vcmask 900096
  %v152 = vsel %vm151, %v140, %v142
  %v153 = vsel %vm151, %v142, %v144
  %v154 = vsel %vm151, %v146, %v148
  %v155 = vsel %vm151, %v148, %v150
  %v162 = vmul.f32 %v137, %v152
  %v163 = vmul.f32 %v137, %v153
  %v164 = vmul.f32 %v137, %v144
  %v165 = vmul.f32 %v137, %v154
  %v166 = vmul.f32 %v137, %v155
  %v167 = vmul.f32 %v137, %v150
  %v168 = vadd.f32 %v129, %v162
  %v169 = vadd.f32 %v130, %v163
  %v170 = vadd.f32 %v131, %v164
  %v171 = vadd.f32 %v132, %v165
  %v172 = vadd.f32 %v133, %v166
  %v173 = vadd.f32 %v134, %v167
  %174 = vset.pattern.permute.xlu0 4
  %175 = vperm.xlu0 %174, %v37
  %v176 = vpop.permute.xlu0 %175
  %178 = vrot.lane.b32.xlu0 %v33, 109
  %v179 = vpop.permute.xlu0 %178
  %180 = vrot.lane.b32.xlu0 %v47, 109
  %v181 = vpop.permute.xlu0 %180
  %182 = vrot.lane.b32.xlu0 %v34, 109
  %v183 = vpop.permute.xlu0 %182
  %184 = vrot.lane.b32.xlu0 %v35, 109
  %v185 = vpop.permute.xlu0 %184
  %186 = vrot.lane.b32.xlu0 %v48, 109
  %v187 = vpop.permute.xlu0 %186
  %188 = vrot.lane.b32.xlu0 %v36, 109
  %v189 = vpop.permute.xlu0 %188
  %vm190 = vcmask 891904
  %v191 = vsel %vm190, %v179, %v181
  %v192 = vsel %vm190, %v181, %v183
  %v193 = vsel %vm190, %v185, %v187
  %v194 = vsel %vm190, %v187, %v189
  %v201 = vmul.f32 %v176, %v191
  %v202 = vmul.f32 %v176, %v192
  %v203 = vmul.f32 %v176, %v183
  %v204 = vmul.f32 %v176, %v193
  %v205 = vmul.f32 %v176, %v194
  %v206 = vmul.f32 %v176, %v189
  %v207 = vadd.f32 %v168, %v201
  %v208 = vadd.f32 %v169, %v202
  %v209 = vadd.f32 %v170, %v203
  %v210 = vadd.f32 %v171, %v204
  %v211 = vadd.f32 %v172, %v205
  %v212 = vadd.f32 %v173, %v206
  %213 = vset.pattern.permute.xlu0 5
  %214 = vperm.xlu0 %213, %v37
  %v215 = vpop.permute.xlu0 %214
  %217 = vrot.lane.b32.xlu0 %v33, 108
  %v218 = vpop.permute.xlu0 %217
  %219 = vrot.lane.b32.xlu0 %v47, 108
  %v220 = vpop.permute.xlu0 %219
  %221 = vrot.lane.b32.xlu0 %v34, 108
  %v222 = vpop.permute.xlu0 %221
  %223 = vrot.lane.b32.xlu0 %v35, 108
  %v224 = vpop.permute.xlu0 %223
  %225 = vrot.lane.b32.xlu0 %v48, 108
  %v226 = vpop.permute.xlu0 %225
  %227 = vrot.lane.b32.xlu0 %v36, 108
  %v228 = vpop.permute.xlu0 %227
  %vm229 = vcmask 883712
  %v230 = vsel %vm229, %v218, %v220
  %v231 = vsel %vm229, %v220, %v222
  %v232 = vsel %vm229, %v224, %v226
  %v233 = vsel %vm229, %v226, %v228
  %v240 = vmul.f32 %v215, %v230
  %v241 = vmul.f32 %v215, %v231
  %v242 = vmul.f32 %v215, %v222
  %v243 = vmul.f32 %v215, %v232
  %v244 = vmul.f32 %v215, %v233
  %v245 = vmul.f32 %v215, %v228
  %v246 = vadd.f32 %v207, %v240
  %v247 = vadd.f32 %v208, %v241
  %v248 = vadd.f32 %v209, %v242
  %v249 = vadd.f32 %v210, %v243
  %v250 = vadd.f32 %v211, %v244
  %v251 = vadd.f32 %v212, %v245
  %252 = vset.pattern.permute.xlu0 6
  %253 = vperm.xlu0 %252, %v37
  %v254 = vpop.permute.xlu0 %253
  %256 = vrot.lane.b32.xlu0 %v33, 92
  %v257 = vpop.permute.xlu0 %256
  %258 = vrot.lane.b32.xlu0 %v47, 92
  %v259 = vpop.permute.xlu0 %258
  %260 = vrot.lane.b32.xlu0 %v34, 92
  %v261 = vpop.permute.xlu0 %260
  %262 = vrot.lane.b32.xlu0 %v35, 92
  %v263 = vpop.permute.xlu0 %262
  %264 = vrot.lane.b32.xlu0 %v48, 92
  %v265 = vpop.permute.xlu0 %264
  %266 = vrot.lane.b32.xlu0 %v36, 92
  %v267 = vpop.permute.xlu0 %266
  %vm268 = vcmask 752640
  %v269 = vsel %vm268, %v257, %v259
  %v270 = vsel %vm268, %v259, %v261
  %v271 = vsel %vm268, %v263, %v265
  %v272 = vsel %vm268, %v265, %v267
  %v279 = vmul.f32 %v254, %v269
  %v280 = vmul.f32 %v254, %v270
  %v281 = vmul.f32 %v254, %v261
  %v282 = vmul.f32 %v254, %v271
  %v283 = vmul.f32 %v254, %v272
  %v284 = vmul.f32 %v254, %v267
  %v285 = vadd.f32 %v246, %v279
  %v286 = vadd.f32 %v247, %v280
  %v287 = vadd.f32 %v248, %v281
  %v288 = vadd.f32 %v249, %v282
  %v289 = vadd.f32 %v250, %v283
  %v290 = vadd.f32 %v251, %v284
  %291 = vset.pattern.permute.xlu0 7
  %292 = vperm.xlu0 %291, %v37
  %v293 = vpop.permute.xlu0 %292
  %295 = vrot.lane.b32.xlu0 %v33, 91
  %v296 = vpop.permute.xlu0 %295
  %297 = vrot.lane.b32.xlu0 %v47, 91
  %v298 = vpop.permute.xlu0 %297
  %299 = vrot.lane.b32.xlu0 %v34, 91
  %v300 = vpop.permute.xlu0 %299
  %301 = vrot.lane.b32.xlu0 %v35, 91
  %v302 = vpop.permute.xlu0 %301
  %303 = vrot.lane.b32.xlu0 %v48, 91
  %v304 = vpop.permute.xlu0 %303
  %305 = vrot.lane.b32.xlu0 %v36, 91
  %v306 = vpop.permute.xlu0 %305
  %vm307 = vcmask 744448
  %v308 = vsel %vm307, %v296, %v298
  %v309 = vsel %vm307, %v298, %v300
  %v310 = vsel %vm307, %v302, %v304
  %v311 = vsel %vm307, %v304, %v306
  %v318 = vmul.f32 %v293, %v308
  %v319 = vmul.f32 %v293, %v309
  %v320 = vmul.f32 %v293, %v300
  %v321 = vmul.f32 %v293, %v310
  %v322 = vmul.f32 %v293, %v311
  %v323 = vmul.f32 %v293, %v306
  %v324 = vadd.f32 %v285, %v318
  %v325 = vadd.f32 %v286, %v319
  %v326 = vadd.f32 %v287, %v320
  %v327 = vadd.f32 %v288, %v321
  %v328 = vadd.f32 %v289, %v322
  %v329 = vadd.f32 %v290, %v323
  %330 = vset.pattern.permute.xlu0 8
  %331 = vperm.xlu0 %330, %v37
  %v332 = vpop.permute.xlu0 %331
  %334 = vrot.lane.b32.xlu0 %v33, 90
  %v335 = vpop.permute.xlu0 %334
  %336 = vrot.lane.b32.xlu0 %v47, 90
  %v337 = vpop.permute.xlu0 %336
  %338 = vrot.lane.b32.xlu0 %v34, 90
  %v339 = vpop.permute.xlu0 %338
  %340 = vrot.lane.b32.xlu0 %v35, 90
  %v341 = vpop.permute.xlu0 %340
  %342 = vrot.lane.b32.xlu0 %v48, 90
  %v343 = vpop.permute.xlu0 %342
  %344 = vrot.lane.b32.xlu0 %v36, 90
  %v345 = vpop.permute.xlu0 %344
  %vm346 = vcmask 736256
  %v347 = vsel %vm346, %v335, %v337
  %v348 = vsel %vm346, %v337, %v339
  %v349 = vsel %vm346, %v341, %v343
  %v350 = vsel %vm346, %v343, %v345
  %v357 = vmul.f32 %v332, %v347
  %v358 = vmul.f32 %v332, %v348
  %v359 = vmul.f32 %v332, %v339
  %v360 = vmul.f32 %v332, %v349
  %v361 = vmul.f32 %v332, %v350
  %v362 = vmul.f32 %v332, %v345
  %v363 = vadd.f32 %v324, %v357
  %v364 = vadd.f32 %v325, %v358
  %v365 = vadd.f32 %v326, %v359
  %v366 = vadd.f32 %v327, %v360
  %v367 = vadd.f32 %v328, %v361
  %v368 = vadd.f32 %v329, %v362
  %v369 = vld [vmem:[%s2] sm:$0xf]
  %371 = vset.pattern.permute.xlu0 0
  %372 = vperm.xlu0 %371, %v369
  %v373 = vpop.permute.xlu0 %372
  %v375 = vlaneseq
  %v376 = vshrl.u32 %v375, 7
  %v377 = vsub.s32 0, %v376
  %v378 = vrot.slane %v363, %v377
  %v379 = vlaneseq
  %v380 = vshrl.u32 %v379, 7
  %v381 = vsub.s32 0, %v380
  %v382 = vrot.slane %v364, %v381
  %v383 = vlaneseq
  %v384 = vshrl.u32 %v383, 7
  %v385 = vsub.s32 0, %v384
  %v386 = vrot.slane %v365, %v385
  %v387 = vlaneseq
  %v388 = vshrl.u32 %v387, 7
  %v389 = vsub.s32 0, %v388
  %v390 = vrot.slane %v366, %v389
  %v391 = vlaneseq
  %v392 = vshrl.u32 %v391, 7
  %v393 = vsub.s32 0, %v392
  %v394 = vrot.slane %v367, %v393
  %v395 = vlaneseq
  %v396 = vshrl.u32 %v395, 7
  %v397 = vsub.s32 0, %v396
  %v398 = vrot.slane %v368, %v397
  %v399 = vmul.f32 %v373, %v378
  %v400 = vmul.f32 %v373, %v382
  %v401 = vmul.f32 %v373, %v386
  %v402 = vmul.f32 %v373, %v390
  %v403 = vmul.f32 %v373, %v394
  %v404 = vmul.f32 %v373, %v398
  %405 = vset.pattern.permute.xlu0 1
  %406 = vperm.xlu0 %405, %v369
  %v407 = vpop.permute.xlu0 %406
  %v409 = vlaneseq
  %v410 = vshrl.u32 %v409, 7
  %v411 = vsub.s32 1, %v410
  %v412 = vrot.slane %v363, %v411
  %v413 = vlaneseq
  %v414 = vshrl.u32 %v413, 7
  %v415 = vsub.s32 1, %v414
  %v416 = vrot.slane %v364, %v415
  %v417 = vlaneseq
  %v418 = vshrl.u32 %v417, 7
  %v419 = vsub.s32 1, %v418
  %v420 = vrot.slane %v365, %v419
  %v421 = vlaneseq
  %v422 = vshrl.u32 %v421, 7
  %v423 = vsub.s32 1, %v422
  %v424 = vrot.slane %v366, %v423
  %v425 = vlaneseq
  %v426 = vshrl.u32 %v425, 7
  %v427 = vsub.s32 1, %v426
  %v428 = vrot.slane %v367, %v427
  %v429 = vlaneseq
  %v430 = vshrl.u32 %v429, 7
  %v431 = vsub.s32 1, %v430
  %v432 = vrot.slane %v368, %v431
  %v433 = vmul.f32 %v407, %v412
  %v434 = vmul.f32 %v407, %v416
  %v435 = vmul.f32 %v407, %v420
  %v436 = vmul.f32 %v407, %v424
  %v437 = vmul.f32 %v407, %v428
  %v438 = vmul.f32 %v407, %v432
  %v439 = vadd.f32 %v399, %v433
  %v440 = vadd.f32 %v400, %v434
  %v441 = vadd.f32 %v401, %v435
  %v442 = vadd.f32 %v402, %v436
  %v443 = vadd.f32 %v403, %v437
  %v444 = vadd.f32 %v404, %v438
  %445 = vset.pattern.permute.xlu0 2
  %446 = vperm.xlu0 %445, %v369
  %v447 = vpop.permute.xlu0 %446
  %v449 = vlaneseq
  %v450 = vshrl.u32 %v449, 7
  %v451 = vsub.s32 2, %v450
  %v452 = vrot.slane %v363, %v451
  %v453 = vlaneseq
  %v454 = vshrl.u32 %v453, 7
  %v455 = vsub.s32 2, %v454
  %v456 = vrot.slane %v364, %v455
  %v457 = vlaneseq
  %v458 = vshrl.u32 %v457, 7
  %v459 = vsub.s32 2, %v458
  %v460 = vrot.slane %v365, %v459
  %v461 = vlaneseq
  %v462 = vshrl.u32 %v461, 7
  %v463 = vsub.s32 2, %v462
  %v464 = vrot.slane %v366, %v463
  %v465 = vlaneseq
  %v466 = vshrl.u32 %v465, 7
  %v467 = vsub.s32 2, %v466
  %v468 = vrot.slane %v367, %v467
  %v469 = vlaneseq
  %v470 = vshrl.u32 %v469, 7
  %v471 = vsub.s32 2, %v470
  %v472 = vrot.slane %v368, %v471
  %v473 = vmul.f32 %v447, %v452
  %v474 = vmul.f32 %v447, %v456
  %v475 = vmul.f32 %v447, %v460
  %v476 = vmul.f32 %v447, %v464
  %v477 = vmul.f32 %v447, %v468
  %v478 = vmul.f32 %v447, %v472
  %v479 = vadd.f32 %v439, %v473
  %v480 = vadd.f32 %v440, %v474
  %v481 = vadd.f32 %v441, %v475
  %v482 = vadd.f32 %v442, %v476
  %v483 = vadd.f32 %v443, %v477
  %v484 = vadd.f32 %v444, %v478
  %485 = vset.pattern.permute.xlu0 3
  %486 = vperm.xlu0 %485, %v369
  %v487 = vpop.permute.xlu0 %486
  %v489 = vlaneseq
  %v490 = vshrl.u32 %v489, 7
  %v491 = vsub.s32 3, %v490
  %v492 = vrot.slane %v363, %v491
  %v493 = vlaneseq
  %v494 = vshrl.u32 %v493, 7
  %v495 = vsub.s32 3, %v494
  %v496 = vrot.slane %v364, %v495
  %v497 = vlaneseq
  %v498 = vshrl.u32 %v497, 7
  %v499 = vsub.s32 3, %v498
  %v500 = vrot.slane %v365, %v499
  %v501 = vlaneseq
  %v502 = vshrl.u32 %v501, 7
  %v503 = vsub.s32 3, %v502
  %v504 = vrot.slane %v366, %v503
  %v505 = vlaneseq
  %v506 = vshrl.u32 %v505, 7
  %v507 = vsub.s32 3, %v506
  %v508 = vrot.slane %v367, %v507
  %v509 = vlaneseq
  %v510 = vshrl.u32 %v509, 7
  %v511 = vsub.s32 3, %v510
  %v512 = vrot.slane %v368, %v511
  %v513 = vmul.f32 %v487, %v492
  %v514 = vmul.f32 %v487, %v496
  %v515 = vmul.f32 %v487, %v500
  %v516 = vmul.f32 %v487, %v504
  %v517 = vmul.f32 %v487, %v508
  %v518 = vmul.f32 %v487, %v512
  %v519 = vadd.f32 %v479, %v513
  %v520 = vadd.f32 %v480, %v514
  %v521 = vadd.f32 %v481, %v515
  %v522 = vadd.f32 %v482, %v516
  %v523 = vadd.f32 %v483, %v517
  %v524 = vadd.f32 %v484, %v518
  %v525 = vld [vmem:[%s5] sm:$0x7]
  %v527 = vlaneseq
  %v528 = vshrl.u32 %v527, 7
  %v529 = vsub.s32 0, %v528
  %v530 = vrot.slane %v525, %v529
  %v531 = vlaneseq
  %v532 = vshrl.u32 %v531, 7
  %v533 = vsub.s32 1, %v532
  %v534 = vrot.slane %v525, %v533
  %v535 = vlaneseq
  %v536 = vshrl.u32 %v535, 7
  %v537 = vsub.s32 2, %v536
  %v538 = vrot.slane %v525, %v537
  %v542 = vmul.f32 %v519, %v530
  %v543 = vmul.f32 %v520, %v534
  %v544 = vmul.f32 %v521, %v538
  %v545 = vmul.f32 %v522, %v530
  %v546 = vmul.f32 %v523, %v534
  %v547 = vmul.f32 %v524, %v538
  %vm548 = vcmask 1043456
  %v549 = vsel %vm548, %v542, 0.0
  %v550 = vsel %vm548, %v543, 0.0
  %v551 = vadd.f32 %v549, %v550
  %vm552 = vcmask 240640
  %v553 = vsel %vm552, %v544, 0.0
  %v554 = vadd.f32 %v551, %v553
  %555 = vadd.xlane.f32.xlu0 %v554
  %v556 = vpop.xlane.xlu0 %555
  %v557 = vsel %vm548, %v545, 0.0
  %v558 = vsel %vm548, %v546, 0.0
  %v559 = vadd.f32 %v557, %v558
  %v560 = vsel %vm552, %v547, 0.0
  %v561 = vadd.f32 %v559, %v560
  %562 = vadd.xlane.f32.xlu0 %v561
  %v563 = vpop.xlane.xlu0 %562
  %v564 = vsel %vm548, %v556, 0.0
  %v565 = vsel %vm548, %v563, 0.0
  %v566 = vadd.f32 %v564, %v565
  %v567 = vmul.f32 %v566, 0.001953125
  %v568 = vsub.f32 %v519, %v567
  %v569 = vsub.f32 %v520, %v567
  %v570 = vsub.f32 %v521, %v567
  %v571 = vsub.f32 %v522, %v567
  %v572 = vsub.f32 %v523, %v567
  %v573 = vsub.f32 %v524, %v567
  %v574 = vmul.f32 %v568, %v568
  %v575 = vmul.f32 %v569, %v569
  %v576 = vmul.f32 %v570, %v570
  %v577 = vmul.f32 %v571, %v571
  %v578 = vmul.f32 %v572, %v572
  %v579 = vmul.f32 %v573, %v573
  %v580 = vmul.f32 %v574, %v530
  %v581 = vmul.f32 %v575, %v534
  %v582 = vmul.f32 %v576, %v538
  %v583 = vmul.f32 %v577, %v530
  %v584 = vmul.f32 %v578, %v534
  %v585 = vmul.f32 %v579, %v538
  %v586 = vsel %vm548, %v580, 0.0
  %v587 = vsel %vm548, %v581, 0.0
  %v588 = vadd.f32 %v586, %v587
  %v589 = vsel %vm552, %v582, 0.0
  %v590 = vadd.f32 %v588, %v589
  %591 = vadd.xlane.f32.xlu0 %v590
  %v592 = vpop.xlane.xlu0 %591
  %v593 = vsel %vm548, %v583, 0.0
  %v594 = vsel %vm548, %v584, 0.0
  %v595 = vadd.f32 %v593, %v594
  %v596 = vsel %vm552, %v585, 0.0
  %v597 = vadd.f32 %v595, %v596
  %598 = vadd.xlane.f32.xlu0 %v597
  %v599 = vpop.xlane.xlu0 %598
  %v600 = vsel %vm548, %v592, 0.0
  %v601 = vsel %vm548, %v599, 0.0
  %v602 = vadd.f32 %v600, %v601
  %v603 = vmul.f32 %v602, 0.001953125
  %v604 = vadd.f32 %v603, 1e-05
  %v605 = vrsqrt.pop %v604
  %v606 = vmul.f32 %v568, %v605
  %v607 = vmul.f32 %v569, %v605
  %v608 = vmul.f32 %v570, %v605
  %v609 = vmul.f32 %v571, %v605
  %v610 = vmul.f32 %v572, %v605
  %v611 = vmul.f32 %v573, %v605
  %v612 = vmax.f32 %v606, 0.0
  %v613 = vmax.f32 %v607, 0.0
  %v614 = vmax.f32 %v608, 0.0
  %v615 = vmax.f32 %v609, 0.0
  %v616 = vmax.f32 %v610, 0.0
  %v617 = vmax.f32 %v611, 0.0
  %v618 = vmul.f32 %v612, %v530
  %v619 = vmul.f32 %v613, %v534
  %v620 = vmul.f32 %v614, %v538
  %v621 = vmul.f32 %v615, %v530
  %v622 = vmul.f32 %v616, %v534
  %v623 = vmul.f32 %v617, %v538
  %630 = vrot.lane.b32.xlu0 %v618, 19
  %v631 = vpop.permute.xlu0 %630
  %632 = vrot.lane.b32.xlu0 %v619, 19
  %v633 = vpop.permute.xlu0 %632
  %634 = vrot.lane.b32.xlu0 %v620, 19
  %v635 = vpop.permute.xlu0 %634
  %636 = vrot.lane.b32.xlu0 %v621, 19
  %v637 = vpop.permute.xlu0 %636
  %638 = vrot.lane.b32.xlu0 %v622, 19
  %v639 = vpop.permute.xlu0 %638
  %640 = vrot.lane.b32.xlu0 %v623, 19
  %v641 = vpop.permute.xlu0 %640
  %vm642 = vcmask 154624
  %v643 = vsel %vm642, %v631, %v633
  %v644 = vsel %vm642, %v633, %v635
  %v645 = vsel %vm642, %v637, %v639
  %v646 = vsel %vm642, %v639, %v641
  %v653 = vsel %vm642, 0.0, %v631
  %v654 = vsel %vm642, 0.0, %v637
  %vm655 = vcmask 400384
  %v656 = vsel %vm655, %v644, 0.0
  %v657 = vsel %vm655, %v646, 0.0
  %v658 = vld [vmem:[%s3] sm:$0xf]
  %660 = vset.pattern.permute.xlu0 0
  %661 = vperm.xlu0 %660, %v658
  %v662 = vpop.permute.xlu0 %661
  %v664 = vmul.f32 %v662, %v653
  %v665 = vmul.f32 %v662, %v643
  %v666 = vmul.f32 %v662, %v656
  %v667 = vmul.f32 %v662, %v654
  %v668 = vmul.f32 %v662, %v645
  %v669 = vmul.f32 %v662, %v657
  %670 = vset.pattern.permute.xlu0 1
  %671 = vperm.xlu0 %670, %v658
  %v672 = vpop.permute.xlu0 %671
  %v674 = vmul.f32 %v672, %v653
  %v675 = vmul.f32 %v672, %v643
  %v676 = vmul.f32 %v672, %v656
  %v677 = vmul.f32 %v672, %v654
  %v678 = vmul.f32 %v672, %v645
  %v679 = vmul.f32 %v672, %v657
  %686 = vrot.lane.b32.xlu0 %v674, 127
  %v687 = vpop.permute.xlu0 %686
  %688 = vrot.lane.b32.xlu0 %v675, 127
  %v689 = vpop.permute.xlu0 %688
  %690 = vrot.lane.b32.xlu0 %v676, 127
  %v691 = vpop.permute.xlu0 %690
  %692 = vrot.lane.b32.xlu0 %v677, 127
  %v693 = vpop.permute.xlu0 %692
  %694 = vrot.lane.b32.xlu0 %v678, 127
  %v695 = vpop.permute.xlu0 %694
  %696 = vrot.lane.b32.xlu0 %v679, 127
  %v697 = vpop.permute.xlu0 %696
  %v698 = vsel %vm73, %v687, %v689
  %v699 = vsel %vm73, %v689, %v691
  %v700 = vsel %vm73, %v693, %v695
  %v701 = vsel %vm73, %v695, %v697
  %v708 = vadd.f32 %v664, %v698
  %v709 = vadd.f32 %v665, %v699
  %v710 = vadd.f32 %v666, %v691
  %v711 = vadd.f32 %v667, %v700
  %v712 = vadd.f32 %v668, %v701
  %v713 = vadd.f32 %v669, %v697
  %714 = vset.pattern.permute.xlu0 2
  %715 = vperm.xlu0 %714, %v658
  %v716 = vpop.permute.xlu0 %715
  %v718 = vmul.f32 %v716, %v653
  %v719 = vmul.f32 %v716, %v643
  %v720 = vmul.f32 %v716, %v656
  %v721 = vmul.f32 %v716, %v654
  %v722 = vmul.f32 %v716, %v645
  %v723 = vmul.f32 %v716, %v657
  %730 = vrot.lane.b32.xlu0 %v718, 126
  %v731 = vpop.permute.xlu0 %730
  %732 = vrot.lane.b32.xlu0 %v719, 126
  %v733 = vpop.permute.xlu0 %732
  %734 = vrot.lane.b32.xlu0 %v720, 126
  %v735 = vpop.permute.xlu0 %734
  %736 = vrot.lane.b32.xlu0 %v721, 126
  %v737 = vpop.permute.xlu0 %736
  %738 = vrot.lane.b32.xlu0 %v722, 126
  %v739 = vpop.permute.xlu0 %738
  %740 = vrot.lane.b32.xlu0 %v723, 126
  %v741 = vpop.permute.xlu0 %740
  %v742 = vsel %vm112, %v731, %v733
  %v743 = vsel %vm112, %v733, %v735
  %v744 = vsel %vm112, %v737, %v739
  %v745 = vsel %vm112, %v739, %v741
  %v752 = vadd.f32 %v708, %v742
  %v753 = vadd.f32 %v709, %v743
  %v754 = vadd.f32 %v710, %v735
  %v755 = vadd.f32 %v711, %v744
  %v756 = vadd.f32 %v712, %v745
  %v757 = vadd.f32 %v713, %v741
  %758 = vset.pattern.permute.xlu0 3
  %759 = vperm.xlu0 %758, %v658
  %v760 = vpop.permute.xlu0 %759
  %v762 = vmul.f32 %v760, %v653
  %v763 = vmul.f32 %v760, %v643
  %v764 = vmul.f32 %v760, %v656
  %v765 = vmul.f32 %v760, %v654
  %v766 = vmul.f32 %v760, %v645
  %v767 = vmul.f32 %v760, %v657
  %774 = vrot.lane.b32.xlu0 %v762, 110
  %v775 = vpop.permute.xlu0 %774
  %776 = vrot.lane.b32.xlu0 %v763, 110
  %v777 = vpop.permute.xlu0 %776
  %778 = vrot.lane.b32.xlu0 %v764, 110
  %v779 = vpop.permute.xlu0 %778
  %780 = vrot.lane.b32.xlu0 %v765, 110
  %v781 = vpop.permute.xlu0 %780
  %782 = vrot.lane.b32.xlu0 %v766, 110
  %v783 = vpop.permute.xlu0 %782
  %784 = vrot.lane.b32.xlu0 %v767, 110
  %v785 = vpop.permute.xlu0 %784
  %v786 = vsel %vm151, %v775, %v777
  %v787 = vsel %vm151, %v777, %v779
  %v788 = vsel %vm151, %v781, %v783
  %v789 = vsel %vm151, %v783, %v785
  %v796 = vadd.f32 %v752, %v786
  %v797 = vadd.f32 %v753, %v787
  %v798 = vadd.f32 %v754, %v779
  %v799 = vadd.f32 %v755, %v788
  %v800 = vadd.f32 %v756, %v789
  %v801 = vadd.f32 %v757, %v785
  %802 = vset.pattern.permute.xlu0 4
  %803 = vperm.xlu0 %802, %v658
  %v804 = vpop.permute.xlu0 %803
  %v806 = vmul.f32 %v804, %v653
  %v807 = vmul.f32 %v804, %v643
  %v808 = vmul.f32 %v804, %v656
  %v809 = vmul.f32 %v804, %v654
  %v810 = vmul.f32 %v804, %v645
  %v811 = vmul.f32 %v804, %v657
  %818 = vrot.lane.b32.xlu0 %v806, 109
  %v819 = vpop.permute.xlu0 %818
  %820 = vrot.lane.b32.xlu0 %v807, 109
  %v821 = vpop.permute.xlu0 %820
  %822 = vrot.lane.b32.xlu0 %v808, 109
  %v823 = vpop.permute.xlu0 %822
  %824 = vrot.lane.b32.xlu0 %v809, 109
  %v825 = vpop.permute.xlu0 %824
  %826 = vrot.lane.b32.xlu0 %v810, 109
  %v827 = vpop.permute.xlu0 %826
  %828 = vrot.lane.b32.xlu0 %v811, 109
  %v829 = vpop.permute.xlu0 %828
  %v830 = vsel %vm190, %v819, %v821
  %v831 = vsel %vm190, %v821, %v823
  %v832 = vsel %vm190, %v825, %v827
  %v833 = vsel %vm190, %v827, %v829
  %v840 = vadd.f32 %v796, %v830
  %v841 = vadd.f32 %v797, %v831
  %v842 = vadd.f32 %v798, %v823
  %v843 = vadd.f32 %v799, %v832
  %v844 = vadd.f32 %v800, %v833
  %v845 = vadd.f32 %v801, %v829
  %846 = vset.pattern.permute.xlu0 5
  %847 = vperm.xlu0 %846, %v658
  %v848 = vpop.permute.xlu0 %847
  %v850 = vmul.f32 %v848, %v653
  %v851 = vmul.f32 %v848, %v643
  %v852 = vmul.f32 %v848, %v656
  %v853 = vmul.f32 %v848, %v654
  %v854 = vmul.f32 %v848, %v645
  %v855 = vmul.f32 %v848, %v657
  %862 = vrot.lane.b32.xlu0 %v850, 108
  %v863 = vpop.permute.xlu0 %862
  %864 = vrot.lane.b32.xlu0 %v851, 108
  %v865 = vpop.permute.xlu0 %864
  %866 = vrot.lane.b32.xlu0 %v852, 108
  %v867 = vpop.permute.xlu0 %866
  %868 = vrot.lane.b32.xlu0 %v853, 108
  %v869 = vpop.permute.xlu0 %868
  %870 = vrot.lane.b32.xlu0 %v854, 108
  %v871 = vpop.permute.xlu0 %870
  %872 = vrot.lane.b32.xlu0 %v855, 108
  %v873 = vpop.permute.xlu0 %872
  %v874 = vsel %vm229, %v863, %v865
  %v875 = vsel %vm229, %v865, %v867
  %v876 = vsel %vm229, %v869, %v871
  %v877 = vsel %vm229, %v871, %v873
  %v884 = vadd.f32 %v840, %v874
  %v885 = vadd.f32 %v841, %v875
  %v886 = vadd.f32 %v842, %v867
  %v887 = vadd.f32 %v843, %v876
  %v888 = vadd.f32 %v844, %v877
  %v889 = vadd.f32 %v845, %v873
  %890 = vset.pattern.permute.xlu0 6
  %891 = vperm.xlu0 %890, %v658
  %v892 = vpop.permute.xlu0 %891
  %v894 = vmul.f32 %v892, %v653
  %v895 = vmul.f32 %v892, %v643
  %v896 = vmul.f32 %v892, %v656
  %v897 = vmul.f32 %v892, %v654
  %v898 = vmul.f32 %v892, %v645
  %v899 = vmul.f32 %v892, %v657
  %906 = vrot.lane.b32.xlu0 %v894, 92
  %v907 = vpop.permute.xlu0 %906
  %908 = vrot.lane.b32.xlu0 %v895, 92
  %v909 = vpop.permute.xlu0 %908
  %910 = vrot.lane.b32.xlu0 %v896, 92
  %v911 = vpop.permute.xlu0 %910
  %912 = vrot.lane.b32.xlu0 %v897, 92
  %v913 = vpop.permute.xlu0 %912
  %914 = vrot.lane.b32.xlu0 %v898, 92
  %v915 = vpop.permute.xlu0 %914
  %916 = vrot.lane.b32.xlu0 %v899, 92
  %v917 = vpop.permute.xlu0 %916
  %v918 = vsel %vm268, %v907, %v909
  %v919 = vsel %vm268, %v909, %v911
  %v920 = vsel %vm268, %v913, %v915
  %v921 = vsel %vm268, %v915, %v917
  %v928 = vadd.f32 %v884, %v918
  %v929 = vadd.f32 %v885, %v919
  %v930 = vadd.f32 %v886, %v911
  %v931 = vadd.f32 %v887, %v920
  %v932 = vadd.f32 %v888, %v921
  %v933 = vadd.f32 %v889, %v917
  %934 = vset.pattern.permute.xlu0 7
  %935 = vperm.xlu0 %934, %v658
  %v936 = vpop.permute.xlu0 %935
  %v938 = vmul.f32 %v936, %v653
  %v939 = vmul.f32 %v936, %v643
  %v940 = vmul.f32 %v936, %v656
  %v941 = vmul.f32 %v936, %v654
  %v942 = vmul.f32 %v936, %v645
  %v943 = vmul.f32 %v936, %v657
  %950 = vrot.lane.b32.xlu0 %v938, 91
  %v951 = vpop.permute.xlu0 %950
  %952 = vrot.lane.b32.xlu0 %v939, 91
  %v953 = vpop.permute.xlu0 %952
  %954 = vrot.lane.b32.xlu0 %v940, 91
  %v955 = vpop.permute.xlu0 %954
  %956 = vrot.lane.b32.xlu0 %v941, 91
  %v957 = vpop.permute.xlu0 %956
  %958 = vrot.lane.b32.xlu0 %v942, 91
  %v959 = vpop.permute.xlu0 %958
  %960 = vrot.lane.b32.xlu0 %v943, 91
  %v961 = vpop.permute.xlu0 %960
  %v962 = vsel %vm307, %v951, %v953
  %v963 = vsel %vm307, %v953, %v955
  %v964 = vsel %vm307, %v957, %v959
  %v965 = vsel %vm307, %v959, %v961
  %v972 = vadd.f32 %v928, %v962
  %v973 = vadd.f32 %v929, %v963
  %v974 = vadd.f32 %v930, %v955
  %v975 = vadd.f32 %v931, %v964
  %v976 = vadd.f32 %v932, %v965
  %v977 = vadd.f32 %v933, %v961
  %978 = vset.pattern.permute.xlu0 8
  %979 = vperm.xlu0 %978, %v658
  %v980 = vpop.permute.xlu0 %979
  %v982 = vmul.f32 %v980, %v653
  %v983 = vmul.f32 %v980, %v643
  %v984 = vmul.f32 %v980, %v656
  %v985 = vmul.f32 %v980, %v654
  %v986 = vmul.f32 %v980, %v645
  %v987 = vmul.f32 %v980, %v657
  %994 = vrot.lane.b32.xlu0 %v982, 90
  %v995 = vpop.permute.xlu0 %994
  %996 = vrot.lane.b32.xlu0 %v983, 90
  %v997 = vpop.permute.xlu0 %996
  %998 = vrot.lane.b32.xlu0 %v984, 90
  %v999 = vpop.permute.xlu0 %998
  %1000 = vrot.lane.b32.xlu0 %v985, 90
  %v1001 = vpop.permute.xlu0 %1000
  %1002 = vrot.lane.b32.xlu0 %v986, 90
  %v1003 = vpop.permute.xlu0 %1002
  %1004 = vrot.lane.b32.xlu0 %v987, 90
  %v1005 = vpop.permute.xlu0 %1004
  %v1006 = vsel %vm346, %v995, %v997
  %v1007 = vsel %vm346, %v997, %v999
  %v1008 = vsel %vm346, %v1001, %v1003
  %v1009 = vsel %vm346, %v1003, %v1005
  %v1016 = vadd.f32 %v972, %v1006
  %v1017 = vadd.f32 %v973, %v1007
  %v1018 = vadd.f32 %v974, %v999
  %v1019 = vadd.f32 %v975, %v1008
  %v1020 = vadd.f32 %v976, %v1009
  %v1021 = vadd.f32 %v977, %v1005
  %v1022 = vld [vmem:[%s4] sm:$0xff]
  %1024 = vset.pattern.permute.xlu0 0
  %1025 = vperm.xlu0 %1024, %v1022
  %v1026 = vpop.permute.xlu0 %1025
  %v1028 = vlaneseq
  %v1029 = vshrl.u32 %v1028, 7
  %v1030 = vsub.s32 0, %v1029
  %v1031 = vrot.slane %v1016, %v1030
  %v1032 = vlaneseq
  %v1033 = vshrl.u32 %v1032, 7
  %v1034 = vsub.s32 0, %v1033
  %v1035 = vrot.slane %v1017, %v1034
  %v1036 = vlaneseq
  %v1037 = vshrl.u32 %v1036, 7
  %v1038 = vsub.s32 0, %v1037
  %v1039 = vrot.slane %v1018, %v1038
  %v1040 = vlaneseq
  %v1041 = vshrl.u32 %v1040, 7
  %v1042 = vsub.s32 0, %v1041
  %v1043 = vrot.slane %v1019, %v1042
  %v1044 = vlaneseq
  %v1045 = vshrl.u32 %v1044, 7
  %v1046 = vsub.s32 0, %v1045
  %v1047 = vrot.slane %v1020, %v1046
  %v1048 = vlaneseq
  %v1049 = vshrl.u32 %v1048, 7
  %v1050 = vsub.s32 0, %v1049
  %v1051 = vrot.slane %v1021, %v1050
  %v1052 = vmul.f32 %v1026, %v1031
  %v1053 = vmul.f32 %v1026, %v1035
  %v1054 = vmul.f32 %v1026, %v1039
  %v1055 = vmul.f32 %v1026, %v1043
  %v1056 = vmul.f32 %v1026, %v1047
  %v1057 = vmul.f32 %v1026, %v1051
  %1058 = vset.pattern.permute.xlu0 1
  %1059 = vperm.xlu0 %1058, %v1022
  %v1060 = vpop.permute.xlu0 %1059
  %v1062 = vlaneseq
  %v1063 = vshrl.u32 %v1062, 7
  %v1064 = vsub.s32 1, %v1063
  %v1065 = vrot.slane %v1016, %v1064
  %v1066 = vlaneseq
  %v1067 = vshrl.u32 %v1066, 7
  %v1068 = vsub.s32 1, %v1067
  %v1069 = vrot.slane %v1017, %v1068
  %v1070 = vlaneseq
  %v1071 = vshrl.u32 %v1070, 7
  %v1072 = vsub.s32 1, %v1071
  %v1073 = vrot.slane %v1018, %v1072
  %v1074 = vlaneseq
  %v1075 = vshrl.u32 %v1074, 7
  %v1076 = vsub.s32 1, %v1075
  %v1077 = vrot.slane %v1019, %v1076
  %v1078 = vlaneseq
  %v1079 = vshrl.u32 %v1078, 7
  %v1080 = vsub.s32 1, %v1079
  %v1081 = vrot.slane %v1020, %v1080
  %v1082 = vlaneseq
  %v1083 = vshrl.u32 %v1082, 7
  %v1084 = vsub.s32 1, %v1083
  %v1085 = vrot.slane %v1021, %v1084
  %v1086 = vmul.f32 %v1060, %v1065
  %v1087 = vmul.f32 %v1060, %v1069
  %v1088 = vmul.f32 %v1060, %v1073
  %v1089 = vmul.f32 %v1060, %v1077
  %v1090 = vmul.f32 %v1060, %v1081
  %v1091 = vmul.f32 %v1060, %v1085
  %v1092 = vadd.f32 %v1052, %v1086
  %v1093 = vadd.f32 %v1053, %v1087
  %v1094 = vadd.f32 %v1054, %v1088
  %v1095 = vadd.f32 %v1055, %v1089
  %v1096 = vadd.f32 %v1056, %v1090
  %v1097 = vadd.f32 %v1057, %v1091
  %1098 = vset.pattern.permute.xlu0 2
  %1099 = vperm.xlu0 %1098, %v1022
  %v1100 = vpop.permute.xlu0 %1099
  %v1102 = vlaneseq
  %v1103 = vshrl.u32 %v1102, 7
  %v1104 = vsub.s32 2, %v1103
  %v1105 = vrot.slane %v1016, %v1104
  %v1106 = vlaneseq
  %v1107 = vshrl.u32 %v1106, 7
  %v1108 = vsub.s32 2, %v1107
  %v1109 = vrot.slane %v1017, %v1108
  %v1110 = vlaneseq
  %v1111 = vshrl.u32 %v1110, 7
  %v1112 = vsub.s32 2, %v1111
  %v1113 = vrot.slane %v1018, %v1112
  %v1114 = vlaneseq
  %v1115 = vshrl.u32 %v1114, 7
  %v1116 = vsub.s32 2, %v1115
  %v1117 = vrot.slane %v1019, %v1116
  %v1118 = vlaneseq
  %v1119 = vshrl.u32 %v1118, 7
  %v1120 = vsub.s32 2, %v1119
  %v1121 = vrot.slane %v1020, %v1120
  %v1122 = vlaneseq
  %v1123 = vshrl.u32 %v1122, 7
  %v1124 = vsub.s32 2, %v1123
  %v1125 = vrot.slane %v1021, %v1124
  %v1126 = vmul.f32 %v1100, %v1105
  %v1127 = vmul.f32 %v1100, %v1109
  %v1128 = vmul.f32 %v1100, %v1113
  %v1129 = vmul.f32 %v1100, %v1117
  %v1130 = vmul.f32 %v1100, %v1121
  %v1131 = vmul.f32 %v1100, %v1125
  %v1132 = vadd.f32 %v1092, %v1126
  %v1133 = vadd.f32 %v1093, %v1127
  %v1134 = vadd.f32 %v1094, %v1128
  %v1135 = vadd.f32 %v1095, %v1129
  %v1136 = vadd.f32 %v1096, %v1130
  %v1137 = vadd.f32 %v1097, %v1131
  %1138 = vset.pattern.permute.xlu0 3
  %1139 = vperm.xlu0 %1138, %v1022
  %v1140 = vpop.permute.xlu0 %1139
  %v1142 = vlaneseq
  %v1143 = vshrl.u32 %v1142, 7
  %v1144 = vsub.s32 3, %v1143
  %v1145 = vrot.slane %v1016, %v1144
  %v1146 = vlaneseq
  %v1147 = vshrl.u32 %v1146, 7
  %v1148 = vsub.s32 3, %v1147
  %v1149 = vrot.slane %v1017, %v1148
  %v1150 = vlaneseq
  %v1151 = vshrl.u32 %v1150, 7
  %v1152 = vsub.s32 3, %v1151
  %v1153 = vrot.slane %v1018, %v1152
  %v1154 = vlaneseq
  %v1155 = vshrl.u32 %v1154, 7
  %v1156 = vsub.s32 3, %v1155
  %v1157 = vrot.slane %v1019, %v1156
  %v1158 = vlaneseq
  %v1159 = vshrl.u32 %v1158, 7
  %v1160 = vsub.s32 3, %v1159
  %v1161 = vrot.slane %v1020, %v1160
  %v1162 = vlaneseq
  %v1163 = vshrl.u32 %v1162, 7
  %v1164 = vsub.s32 3, %v1163
  %v1165 = vrot.slane %v1021, %v1164
  %v1166 = vmul.f32 %v1140, %v1145
  %v1167 = vmul.f32 %v1140, %v1149
  %v1168 = vmul.f32 %v1140, %v1153
  %v1169 = vmul.f32 %v1140, %v1157
  %v1170 = vmul.f32 %v1140, %v1161
  %v1171 = vmul.f32 %v1140, %v1165
  %v1172 = vadd.f32 %v1132, %v1166
  %v1173 = vadd.f32 %v1133, %v1167
  %v1174 = vadd.f32 %v1134, %v1168
  %v1175 = vadd.f32 %v1135, %v1169
  %v1176 = vadd.f32 %v1136, %v1170
  %v1177 = vadd.f32 %v1137, %v1171
  %v1178 = vld [vmem:[%s6] sm:$0x7]
  %v1180 = vlaneseq
  %v1181 = vshrl.u32 %v1180, 7
  %v1182 = vsub.s32 0, %v1181
  %v1183 = vrot.slane %v1178, %v1182
  %v1184 = vlaneseq
  %v1185 = vshrl.u32 %v1184, 7
  %v1186 = vsub.s32 1, %v1185
  %v1187 = vrot.slane %v1178, %v1186
  %v1188 = vlaneseq
  %v1189 = vshrl.u32 %v1188, 7
  %v1190 = vsub.s32 2, %v1189
  %v1191 = vrot.slane %v1178, %v1190
  %v1195 = vmul.f32 %v1172, %v1183
  %v1196 = vmul.f32 %v1173, %v1187
  %v1197 = vmul.f32 %v1174, %v1191
  %v1198 = vmul.f32 %v1175, %v1183
  %v1199 = vmul.f32 %v1176, %v1187
  %v1200 = vmul.f32 %v1177, %v1191
  %v1201 = vadd.f32 %v1195, %v1196
  %vm1202 = vcmask 244736
  %v1203 = vsel %vm1202, %v1197, 0.0
  %v1204 = vadd.f32 %v1201, %v1203
  %1205 = vadd.xlane.f32.xlu0 %v1204
  %v1206 = vpop.xlane.xlu0 %1205
  %v1207 = vadd.f32 %v1198, %v1199
  %v1208 = vsel %vm1202, %v1200, 0.0
  %v1209 = vadd.f32 %v1207, %v1208
  %1210 = vadd.xlane.f32.xlu0 %v1209
  %v1211 = vpop.xlane.xlu0 %1210
  %v1212 = vadd.f32 %v1206, %v1211
  %v1213 = vmul.f32 %v1212, 0.001953125
  %v1214 = vsub.f32 %v1172, %v1213
  %v1215 = vsub.f32 %v1173, %v1213
  %v1216 = vsub.f32 %v1174, %v1213
  %v1217 = vsub.f32 %v1175, %v1213
  %v1218 = vsub.f32 %v1176, %v1213
  %v1219 = vsub.f32 %v1177, %v1213
  %v1220 = vmul.f32 %v1214, %v1214
  %v1221 = vmul.f32 %v1215, %v1215
  %v1222 = vmul.f32 %v1216, %v1216
  %v1223 = vmul.f32 %v1217, %v1217
  %v1224 = vmul.f32 %v1218, %v1218
  %v1225 = vmul.f32 %v1219, %v1219
  %v1226 = vmul.f32 %v1220, %v1183
  %v1227 = vmul.f32 %v1221, %v1187
  %v1228 = vmul.f32 %v1222, %v1191
  %v1229 = vmul.f32 %v1223, %v1183
  %v1230 = vmul.f32 %v1224, %v1187
  %v1231 = vmul.f32 %v1225, %v1191
  %v1232 = vadd.f32 %v1226, %v1227
  %v1233 = vsel %vm1202, %v1228, 0.0
  %v1234 = vadd.f32 %v1232, %v1233
  %1235 = vadd.xlane.f32.xlu0 %v1234
  %v1236 = vpop.xlane.xlu0 %1235
  %v1237 = vadd.f32 %v1229, %v1230
  %v1238 = vsel %vm1202, %v1231, 0.0
  %v1239 = vadd.f32 %v1237, %v1238
  %1240 = vadd.xlane.f32.xlu0 %v1239
  %v1241 = vpop.xlane.xlu0 %1240
  %v1242 = vadd.f32 %v1236, %v1241
  %v1243 = vmul.f32 %v1242, 0.001953125
  %v1244 = vadd.f32 %v1243, 1e-05
  %v1245 = vrsqrt.pop %v1244
  %v1246 = vmul.f32 %v1214, %v1245
  %v1247 = vmul.f32 %v1215, %v1245
  %v1248 = vmul.f32 %v1216, %v1245
  %v1249 = vmul.f32 %v1217, %v1245
  %v1250 = vmul.f32 %v1218, %v1245
  %v1251 = vmul.f32 %v1219, %v1245
  %1252 = vst [vmem:[%s8] sm:$0xff] %v1246
  %1253 = vst [vmem:[%s8 + $0x8] sm:$0xff] %v1247
  %1254 = vst.msk [vmem:[%s8 + $0x10] sm:$0xff] %vm1202, %v1248
  %1255 = vst [vmem:[%s8 + $0x18] sm:$0xff] %v1249
  %1256 = vst [vmem:[%s8 + $0x20] sm:$0xff] %v1250
  %1257 = vst.msk [vmem:[%s8 + $0x28] sm:$0xff] %vm1202, %v1251
  // Predicated region
  $region34: #{sepconv_forward.1} parent=0 // pred_check
    _
  $region35: #{sepconv_forward.1} parent=0 // pred_check_branch
    %1259 = sbr.rel (0) target = $region37
  $region36: #{sepconv_forward.1} parent=0 // pred_region
    _
  $region37: #{sepconv_forward.1} parent=0 // pred_fallthru
    _
  // Predicated region
  $region38: #{sepconv_forward.1} parent=0 // pred_check
    _
  $region39: #{sepconv_forward.1} parent=0 // pred_check_branch
    %1261 = sbr.rel (0) target = $region41
  $region40: #{sepconv_forward.1} parent=0 // pred_region
    _
  $region41: #{sepconv_forward.1} parent=0 // pred_fallthru
    _

</llo_original>
